<compile_context>
chip_gen: v7x
topology: tpu7x:2x2x1
jax: 0.10.0
libtpu: 0.0.40
codegen_flags: <defaults>
</compile_context>

<pallas_src>
import jax
import jax.numpy as jnp
from jax import lax
from jax.experimental import pallas as pl
from jax.experimental.pallas import tpu as pltpu

ACC_W = 128  # lane width of the per-row partial-sum accumulator


def _round_up(x, m):
    return ((x + m - 1) // m) * m


def _tpu_config():
    """(tensorcores_per_chip, vmem_bytes) with conservative fallbacks."""
    num_tc, vmem = 1, 64 * 1024 * 1024
    try:
        info = pltpu.get_tpu_info()
        vmem = int(getattr(info, "vmem_capacity_bytes", vmem))
        for f in ("num_tensorcores", "tensorcores_per_chip", "num_cores",
                  "cores_per_chip", "core_count"):
            v = getattr(info, f, None)
            if v:
                num_tc = int(v)
                break
    except Exception:
        pass
    try:
        if "v7" in jax.devices()[0].device_kind.lower():
            num_tc = max(num_tc, 2)
    except Exception:
        pass
    return num_tc, vmem


def _make_pool_kernel(tile_hw, hw, need_mask):
    """Kernel: accumulate lane-dense (row_blk, 128) f32 partial sums per input."""
    n_chunks = tile_hw // ACC_W

    def kernel(x1_ref, x2_ref, x3_ref, s1_ref, s2_ref, s3_ref):
        t = pl.program_id(1)

        @pl.when(t == 0)
        def _init():
            s1_ref[...] = jnp.zeros_like(s1_ref)
            s2_ref[...] = jnp.zeros_like(s2_ref)
            s3_ref[...] = jnp.zeros_like(s3_ref)

        if need_mask:
            base = t * tile_hw
            lane = lax.broadcasted_iota(jnp.int32, (1, ACC_W), 1)

        def tile_partial(x_ref):
            part = None
            for i in range(n_chunks):
                chunk = x_ref[:, i * ACC_W:(i + 1) * ACC_W].astype(jnp.float32)
                if need_mask:
                    col = base + i * ACC_W + lane          # (1, ACC_W) column index
                    chunk = jnp.where(col < hw, chunk, 0.0)
                part = chunk if part is None else part + chunk
            return part

        # Full-vreg VALU adds + one unmasked 128-lane accumulator update per input;
        # easily hidden under the input DMA (kernel is HBM-bandwidth bound).
        s1_ref[...] += tile_partial(x1_ref)
        s2_ref[...] += tile_partial(x2_ref)
        s3_ref[...] += tile_partial(x3_ref)

    return kernel


def concatenate_feature_forward(x1, x2, x3, w, b):
    """x1, x2, x3: (2, 256, H, W) NCHW.  w: (num_class, 768).  b: (num_class,)."""
    N, C_per, H, W = x1.shape
    assert x2.shape == x1.shape and x3.shape == x1.shape
    assert N == 2, "module's view(1, 2, -1, 1, 1) requires batch size 2"
    HW = H * W
    R = N * C_per                                # rows per input in (N*C, H*W) layout
    num_class = w.shape[0]
    assert w.shape == (num_class, 3 * C_per)

    # Free, contiguous reshapes — no relayout, no extra HBM pass.
    x1f = x1.reshape(R, HW)
    x2f = x2.reshape(R, HW)
    x3f = x3.reshape(R, HW)

    itemsize = jnp.dtype(x1.dtype).itemsize
    num_tc, _ = _tpu_config()

    # Row split only pays when there are 2 TensorCores to drive (v7x); on 1-TC
    # v5e/v6e it just doubles grid steps and accumulator init/flush cost.
    n_row_blocks = 2 if num_tc >= 2 else 1
    if R % (8 * n_row_blocks) != 0:
        n_row_blocks = 1
    row_blk = R // n_row_blocks

    # ~4 MiB of one input per grid step (dtype-aware), so the ~0.35 us per-step
    # overhead stays small vs. per-step DMA time on every generation.
    budget = 4 << 20
    cap_lanes = max(ACC_W, (budget // (row_blk * itemsize)) // ACC_W * ACC_W)
    tile_hw = min(cap_lanes, _round_up(HW, ACC_W))      # always a multiple of 128
    grid_t = int(pl.cdiv(HW, tile_hw))
    need_mask = (HW % tile_hw) != 0
    grid = (n_row_blocks, grid_t)

    in_spec = pl.BlockSpec((row_blk, tile_hw), lambda r, t: (r, t))
    out_spec = pl.BlockSpec((row_blk, ACC_W), lambda r, t: (r, 0))
    sum_shape = jax.ShapeDtypeStruct((R, ACC_W), jnp.float32)

    if n_row_blocks > 1:
        # Drive both v7x TensorCores explicitly; a plain "parallel" annotation may
        # leave one idle for this bandwidth-bound reduction.
        dim_sem = (pltpu.CORE_PARALLEL, pltpu.ARBITRARY)
    else:
        dim_sem = ("arbitrary", "arbitrary")

    # 2 buffers x 3 streams for inputs and outputs, plus slack; cap at 48 MiB so the
    # request is always legal on v7x's 64 MiB per-TC VMEM (128 MiB on v5e/v6e).
    vmem_need = 2 * 3 * row_blk * tile_hw * itemsize + 2 * 3 * row_blk * ACC_W * 4
    vmem_limit = int(min(max(vmem_need + (4 << 20), 16 << 20), 48 << 20))

    s1, s2, s3 = pl.pallas_call(
        _make_pool_kernel(tile_hw, HW, need_mask),
        out_shape=(sum_shape, sum_shape, sum_shape),
        grid=grid,
        in_specs=[in_spec, in_spec, in_spec],
        out_specs=(out_spec, out_spec, out_spec),
        compiler_params=pltpu.CompilerParams(
            dimension_semantics=dim_sem,
            vmem_limit_bytes=vmem_limit,
        ),
        cost_estimate=pl.CostEstimate(
            flops=3 * R * HW,
            transcendentals=0,
            bytes_accessed=3 * R * HW * itemsize + 3 * R * ACC_W * 4,
        ),
    )(x1f, x2f, x3f)

    # Tiny epilogue (~6 KiB in, ~15 Kflops) left to XLA: fold the 128 partial lanes,
    # pair-mean + 1/(N*HW) scale, then the 1x1-conv GEMV + bias.
    # TODO(synk): could be fused into the last grid step on 1-TC chips for tiny H*W,
    # but the launch-overhead saving is not worth the extra kernel complexity here.
    inv = 1.0 / float(N * HW)

    def chan_mean(s):
        # rows are n-major (row = n*C_per + c): collapse batch pair + 128 partial lanes.
        return jnp.sum(s.reshape(N, C_per, ACC_W), axis=(0, 2)) * inv      # (C_per,)

    feat = jnp.concatenate(
        [chan_mean(s1), chan_mean(s2), chan_mean(s3)], axis=0)             # (3*C_per,)
    out = feat.astype(jnp.float32) @ w.T.astype(jnp.float32) + b.astype(jnp.float32)
    return out.reshape(1, num_class)


if __name__ == "__main__":
    key = jax.random.PRNGKey(0)
    k1, k2, k3, kw, kb = jax.random.split(key, 5)

    # batch fixed at 2 and 256 channels/view by the module; small spatial for the demo.
    N, C_per, H, W = 2, 256, 16, 16
    num_class = 10
    C_total = 3 * C_per                          # 768, fixed by module __init__

    x1 = jax.random.normal(k1, (N, C_per, H, W), dtype=jnp.float32)
    x2 = jax.random.normal(k2, (N, C_per, H, W), dtype=jnp.float32)
    x3 = jax.random.normal(k3, (N, C_per, H, W), dtype=jnp.float32)

    # deterministic synthetic Conv2d(768, num_class, 1) params
    w = jax.random.normal(kw, (num_class, C_total), dtype=jnp.float32) * 0.02
    b = jax.random.normal(kb, (num_class,), dtype=jnp.float32) * 0.01

    out = jax.block_until_ready(concatenate_feature_forward(x1, x2, x3, w, b))

    # pure-JAX reference mirroring the PyTorch graph
    xcat = jnp.concatenate([x1, x2, x3], axis=1)                   # (2, 768, H, W)
    pooled = jnp.mean(xcat, axis=(2, 3))                           # (2, 768)
    feat = jnp.mean(pooled.reshape(1, 2, -1), axis=1)              # (1, 768)
    ref = feat @ w.T + b                                           # (1, num_class)

    assert out.shape == (1, num_class)
    assert jnp.allclose(out, ref, rtol=1e-5, atol=1e-5)

    print("KERNEL_OK")
</pallas_src>

<mosaic_0001>
module attributes {stable_mosaic.version = 11 : i64} {
  func.func @kernel(%arg0: i32, %arg1: i32, %arg2: memref<512x256xf32, #tpu.memory_space<vmem>>, %arg3: memref<512x256xf32, #tpu.memory_space<vmem>>, %arg4: memref<512x256xf32, #tpu.memory_space<vmem>>, %arg5: memref<512x128xf32, #tpu.memory_space<vmem>>, %arg6: memref<512x128xf32, #tpu.memory_space<vmem>>, %arg7: memref<512x128xf32, #tpu.memory_space<vmem>>) attributes {dimension_semantics = [#tpu.dimension_semantics<arbitrary>, #tpu.dimension_semantics<arbitrary>], iteration_bounds = array<i64: 1, 1>, scalar_prefetch = 0 : i64, scratch_operands = 0 : i64, tpu.core_type = #tpu.core_type<tc>, window_params = [{transform_indices = @transform_0, window_bounds = array<i64: 512, 256>}, {transform_indices = @transform_1, window_bounds = array<i64: 512, 256>}, {transform_indices = @transform_2, window_bounds = array<i64: 512, 256>}, {transform_indices = @transform_3, window_bounds = array<i64: 512, 128>}, {transform_indices = @transform_4, window_bounds = array<i64: 512, 128>}, {transform_indices = @transform_5, window_bounds = array<i64: 512, 128>}]} {
    %c0_i32 = arith.constant 0 : i32
    %0 = arith.cmpi eq, %arg1, %c0_i32 : i32
    %1 = arith.extui %0 : i1 to i32
    %c0_i32_0 = arith.constant 0 : i32
    %2 = arith.cmpi ne, %1, %c0_i32_0 : i32
    scf.if %2 {
      %cst = arith.constant 0.000000e+00 : f32
      %21 = vector.broadcast %cst : f32 to vector<512x128xf32>
      %c0_23 = arith.constant 0 : index
      %c0_24 = arith.constant 0 : index
      %22 = vector.load %arg5[%c0_23, %c0_24] : memref<512x128xf32, #tpu.memory_space<vmem>>, vector<512x128xf32>
      tpu.vector_store %arg5[%c0_23, %c0_24], %21 {strides = array<i32>} : memref<512x128xf32, #tpu.memory_space<vmem>>, vector<512x128xf32>,
      %cst_25 = arith.constant 0.000000e+00 : f32
      %23 = vector.broadcast %cst_25 : f32 to vector<512x128xf32>
      %c0_26 = arith.constant 0 : index
      %c0_27 = arith.constant 0 : index
      %24 = vector.load %arg6[%c0_26, %c0_27] : memref<512x128xf32, #tpu.memory_space<vmem>>, vector<512x128xf32>
      tpu.vector_store %arg6[%c0_26, %c0_27], %23 {strides = array<i32>} : memref<512x128xf32, #tpu.memory_space<vmem>>, vector<512x128xf32>,
      %cst_28 = arith.constant 0.000000e+00 : f32
      %25 = vector.broadcast %cst_28 : f32 to vector<512x128xf32>
      %c0_29 = arith.constant 0 : index
      %c0_30 = arith.constant 0 : index
      %26 = vector.load %arg7[%c0_29, %c0_30] : memref<512x128xf32, #tpu.memory_space<vmem>>, vector<512x128xf32>
      tpu.vector_store %arg7[%c0_29, %c0_30], %25 {strides = array<i32>} : memref<512x128xf32, #tpu.memory_space<vmem>>, vector<512x128xf32>,
    } else {
    }
    %c0 = arith.constant 0 : index
    %c0_1 = arith.constant 0 : index
    %3 = vector.load %arg5[%c0, %c0_1] : memref<512x128xf32, #tpu.memory_space<vmem>>, vector<512x128xf32>
    %c0_2 = arith.constant 0 : index
    %c0_3 = arith.constant 0 : index
    %4 = vector.load %arg2[%c0_2, %c0_3] : memref<512x256xf32, #tpu.memory_space<vmem>>, vector<512x128xf32>
    %c0_4 = arith.constant 0 : index
    %c128 = arith.constant 128 : index
    %5 = vector.load %arg2[%c0_4, %c128] : memref<512x256xf32, #tpu.memory_space<vmem>>, vector<512x128xf32>
    %6 = arith.addf %4, %5 : vector<512x128xf32>
    %7 = arith.addf %3, %6 : vector<512x128xf32>
    %c0_5 = arith.constant 0 : index
    %c0_6 = arith.constant 0 : index
    %8 = vector.load %arg5[%c0_5, %c0_6] : memref<512x128xf32, #tpu.memory_space<vmem>>, vector<512x128xf32>
    tpu.vector_store %arg5[%c0_5, %c0_6], %7 {strides = array<i32>} : memref<512x128xf32, #tpu.memory_space<vmem>>, vector<512x128xf32>,
    %c0_7 = arith.constant 0 : index
    %c0_8 = arith.constant 0 : index
    %9 = vector.load %arg6[%c0_7, %c0_8] : memref<512x128xf32, #tpu.memory_space<vmem>>, vector<512x128xf32>
    %c0_9 = arith.constant 0 : index
    %c0_10 = arith.constant 0 : index
    %10 = vector.load %arg3[%c0_9, %c0_10] : memref<512x256xf32, #tpu.memory_space<vmem>>, vector<512x128xf32>
    %c0_11 = arith.constant 0 : index
    %c128_12 = arith.constant 128 : index
    %11 = vector.load %arg3[%c0_11, %c128_12] : memref<512x256xf32, #tpu.memory_space<vmem>>, vector<512x128xf32>
    %12 = arith.addf %10, %11 : vector<512x128xf32>
    %13 = arith.addf %9, %12 : vector<512x128xf32>
    %c0_13 = arith.constant 0 : index
    %c0_14 = arith.constant 0 : index
    %14 = vector.load %arg6[%c0_13, %c0_14] : memref<512x128xf32, #tpu.memory_space<vmem>>, vector<512x128xf32>
    tpu.vector_store %arg6[%c0_13, %c0_14], %13 {strides = array<i32>} : memref<512x128xf32, #tpu.memory_space<vmem>>, vector<512x128xf32>,
    %c0_15 = arith.constant 0 : index
    %c0_16 = arith.constant 0 : index
    %15 = vector.load %arg7[%c0_15, %c0_16] : memref<512x128xf32, #tpu.memory_space<vmem>>, vector<512x128xf32>
    %c0_17 = arith.constant 0 : index
    %c0_18 = arith.constant 0 : index
    %16 = vector.load %arg4[%c0_17, %c0_18] : memref<512x256xf32, #tpu.memory_space<vmem>>, vector<512x128xf32>
    %c0_19 = arith.constant 0 : index
    %c128_20 = arith.constant 128 : index
    %17 = vector.load %arg4[%c0_19, %c128_20] : memref<512x256xf32, #tpu.memory_space<vmem>>, vector<512x128xf32>
    %18 = arith.addf %16, %17 : vector<512x128xf32>
    %19 = arith.addf %15, %18 : vector<512x128xf32>
    %c0_21 = arith.constant 0 : index
    %c0_22 = arith.constant 0 : index
    %20 = vector.load %arg7[%c0_21, %c0_22] : memref<512x128xf32, #tpu.memory_space<vmem>>, vector<512x128xf32>
    tpu.vector_store %arg7[%c0_21, %c0_22], %19 {strides = array<i32>} : memref<512x128xf32, #tpu.memory_space<vmem>>, vector<512x128xf32>,
    return
  }
  func.func @transform_0(%arg0: i32, %arg1: i32) -> (i32, i32) {
    %c0_i32 = arith.constant 0 : i32
    return %arg0, %arg1 : i32, i32
  }
  func.func @transform_1(%arg0: i32, %arg1: i32) -> (i32, i32) {
    %c0_i32 = arith.constant 0 : i32
    return %arg0, %arg1 : i32, i32
  }
  func.func @transform_2(%arg0: i32, %arg1: i32) -> (i32, i32) {
    %c0_i32 = arith.constant 0 : i32
    return %arg0, %arg1 : i32, i32
  }
  func.func @transform_3(%arg0: i32, %arg1: i32) -> (i32, i32) {
    %c0_i32 = arith.constant 0 : i32
    %c0_i32_0 = arith.constant 0 : i32
    return %arg0, %c0_i32 : i32, i32
  }
  func.func @transform_4(%arg0: i32, %arg1: i32) -> (i32, i32) {
    %c0_i32 = arith.constant 0 : i32
    %c0_i32_0 = arith.constant 0 : i32
    return %arg0, %c0_i32 : i32, i32
  }
  func.func @transform_5(%arg0: i32, %arg1: i32) -> (i32, i32) {
    %c0_i32 = arith.constant 0 : i32
    %c0_i32_0 = arith.constant 0 : i32
    return %arg0, %c0_i32 : i32, i32
  }
}

</mosaic_0001>

<llo_original>
// kernel: tpu_custom_call.1
$region0: #{tpu_custom_call.1}
  #allocation0 [shape = 'u32[]', space=smem, size = 0x4, offset = 0x4, fixed_abs, tag = 'smem constant byte address 0x4 - core index']
  #allocation1 [shape = 'u32[144,128]{1,0:T(1,128)}', space=vmem, size = 0x12000, scoped, tag = 'internal scratch']
  %s0 = inlined_call_operand.hbm [shape: f32[512,256], index: 0, kind: input, shape index: {}]
  %s1 = inlined_call_operand.hbm [shape: f32[512,256], index: 1, kind: input, shape index: {}]
  %s2 = inlined_call_operand.hbm [shape: f32[512,256], index: 2, kind: input, shape index: {}]
  %s3 = inlined_call_operand.hbm [shape: f32[512,128], index: 3, kind: output, shape index: {0}]
  %s4 = inlined_call_operand.hbm [shape: f32[512,128], index: 4, kind: output, shape index: {1}]
  %s5 = inlined_call_operand.hbm [shape: f32[512,128], index: 5, kind: output, shape index: {2}]
  %6 = xla_tuple %s3, %s4, %s5
  %s7 = sld [smem:[#allocation0]]
  $region54: #{tpu_custom_call.1} parent=0
    _
  %s9 = ssub.s32 1, %s7
  %s10 = scalar_select 0, %s9, %s7
  $region1: #{tpu_custom_call.1} parent=0
    #allocation2 [shape = 'u8[524288]{0}', space=vmem, size = 0x80000, scoped, tag = 'input window, operand 0, single buffered']
    #allocation3 [shape = 's32[1]{0}', space=sflag, size = 0x4, scoped, tag = 'scoped memory for tpu_custom_call.1']
    #allocation4 [shape = 's32[1]{0}', space=sflag, size = 0x4, scoped, tag = 'scoped memory for tpu_custom_call.1']
    #allocation5 [shape = 'u8[524288]{0}', space=vmem, size = 0x80000, scoped, tag = 'input window, operand 1, single buffered']
    #allocation6 [shape = 's32[1]{0}', space=sflag, size = 0x4, scoped, tag = 'scoped memory for tpu_custom_call.1']
    #allocation7 [shape = 'u8[524288]{0}', space=vmem, size = 0x80000, scoped, tag = 'input window, operand 2, single buffered']
    #allocation8 [shape = 'u8[262144]{0}', space=vmem, size = 0x40000, scoped, tag = 'output window, operand 0, single buffered']
    #allocation9 [shape = 'u8[262144]{0}', space=vmem, size = 0x40000, scoped, tag = 'output window, operand 1, single buffered']
    #allocation10 [shape = 's32[1]{0}', space=sflag, size = 0x4, scoped, tag = 'scoped memory for tpu_custom_call.1']
    #allocation11 [shape = 'u8[262144]{0}', space=vmem, size = 0x40000, scoped, tag = 'output window, operand 2, single buffered']
    %11 = vsyncpa [#allocation3], 0
    %12 = vsyncpa [#allocation6], 0
    %13 = vsyncpa [#allocation4], 0
    %14 = vsyncpa [#allocation10], 0
    // Predicated region
    $region2: #{tpu_custom_call.1} parent=1 // pred_check
      _
    $region3: #{tpu_custom_call.1} parent=1 // pred_check_branch
      %16 = sbr.rel (0) target = $region5
    $region4: #{tpu_custom_call.1} parent=1 // pred_region
      %s18 = ssub.s32 16384, 16384
      %19 = vsyncadd [#allocation3], %s18
      %s20 = sshll.u32 [#allocation2], 4
      %s21 = int_to_ptr.vmem [resolvable:$true] %s20
      %26 = dma.hbm_to_vmem [thread:$0]  %s0, 16384, %s21, [#allocation3], 256, 256, 16
    $region5: #{tpu_custom_call.1} parent=1 // pred_fallthru
      _
    // Predicated region
    $region6: #{tpu_custom_call.1} parent=1 // pred_check
      _
    $region7: #{tpu_custom_call.1} parent=1 // pred_check_branch
      %28 = sbr.rel (0) target = $region9
    $region8: #{tpu_custom_call.1} parent=1 // pred_region
      %s30 = ssub.s32 16384, 16384
      %31 = vsyncadd [#allocation6], %s30
      %s32 = sshll.u32 [#allocation5], 4
      %s33 = int_to_ptr.vmem [resolvable:$true] %s32
      %38 = dma.hbm_to_vmem [thread:$0]  %s1, 16384, %s33, [#allocation6], 256, 256, 16
    $region9: #{tpu_custom_call.1} parent=1 // pred_fallthru
      _
    // Predicated region
    $region10: #{tpu_custom_call.1} parent=1 // pred_check
      _
    $region11: #{tpu_custom_call.1} parent=1 // pred_check_branch
      %40 = sbr.rel (0) target = $region13
    $region12: #{tpu_custom_call.1} parent=1 // pred_region
      %s42 = ssub.s32 16384, 16384
      %43 = vsyncadd [#allocation6], %s42
      %s44 = sshll.u32 [#allocation7], 4
      %s45 = int_to_ptr.vmem [resolvable:$true] %s44
      %50 = dma.hbm_to_vmem [thread:$0]  %s2, 16384, %s45, [#allocation6], 256, 256, 16
    $region13: #{tpu_custom_call.1} parent=1 // pred_fallthru
      _
    // Predicated region
    $region14: #{tpu_custom_call.1} parent=1 // pred_check
      _
    $region15: #{tpu_custom_call.1} parent=1 // pred_check_branch
      %52 = sbr.rel (0) target = $region17
    $region16: #{tpu_custom_call.1} parent=1 // pred_region
      %53 = dma.done [#allocation3], 16384
    $region17: #{tpu_custom_call.1} parent=1 // pred_fallthru
      _
    // Predicated region
    $region18: #{tpu_custom_call.1} parent=1 // pred_check
      _
    $region19: #{tpu_custom_call.1} parent=1 // pred_check_branch
      %55 = sbr.rel (0) target = $region21
    $region20: #{tpu_custom_call.1} parent=1 // pred_region
      %56 = dma.done [#allocation6], 16384
    $region21: #{tpu_custom_call.1} parent=1 // pred_fallthru
      _
    // Predicated region
    $region22: #{tpu_custom_call.1} parent=1 // pred_check
      _
    $region23: #{tpu_custom_call.1} parent=1 // pred_check_branch
      %58 = sbr.rel (0) target = $region25
    $region24: #{tpu_custom_call.1} parent=1 // pred_region
      %59 = dma.done [#allocation6], 16384
    $region25: #{tpu_custom_call.1} parent=1 // pred_fallthru
      _
    %p60 = scmp.eq.s32.totalorder 0, 0
    // Predicated region
    $region26: #{tpu_custom_call.1} parent=1 // pred_check
      %p61 = pneg %p60
    $region27: #{tpu_custom_call.1} parent=1 // pred_check_branch
      %63 = sbr.rel (%p61) target = $region29
    $region28: #{tpu_custom_call.1} parent=1 // pred_region
      %64 = vst [vmem:[#allocation8] sm:$0xff] 0.0
      %65 = vst [vmem:[#allocation8 + $0x8] sm:$0xff] 0.0
      %66 = vst [vmem:[#allocation8 + $0x10] sm:$0xff] 0.0
      %67 = vst [vmem:[#allocation8 + $0x18] sm:$0xff] 0.0
      %68 = vst [vmem:[#allocation8 + $0x20] sm:$0xff] 0.0
      %69 = vst [vmem:[#allocation8 + $0x28] sm:$0xff] 0.0
      %70 = vst [vmem:[#allocation8 + $0x30] sm:$0xff] 0.0
      %71 = vst [vmem:[#allocation8 + $0x38] sm:$0xff] 0.0
      %72 = vst [vmem:[#allocation8 + $0x40] sm:$0xff] 0.0
      %73 = vst [vmem:[#allocation8 + $0x48] sm:$0xff] 0.0
      %74 = vst [vmem:[#allocation8 + $0x50] sm:$0xff] 0.0
      %75 = vst [vmem:[#allocation8 + $0x58] sm:$0xff] 0.0
      %76 = vst [vmem:[#allocation8 + $0x60] sm:$0xff] 0.0
      %77 = vst [vmem:[#allocation8 + $0x68] sm:$0xff] 0.0
      %78 = vst [vmem:[#allocation8 + $0x70] sm:$0xff] 0.0
      %79 = vst [vmem:[#allocation8 + $0x78] sm:$0xff] 0.0
      %80 = vst [vmem:[#allocation8 + $0x80] sm:$0xff] 0.0
      %81 = vst [vmem:[#allocation8 + $0x88] sm:$0xff] 0.0
      %82 = vst [vmem:[#allocation8 + $0x90] sm:$0xff] 0.0
      %83 = vst [vmem:[#allocation8 + $0x98] sm:$0xff] 0.0
      %84 = vst [vmem:[#allocation8 + $0xa0] sm:$0xff] 0.0
      %85 = vst [vmem:[#allocation8 + $0xa8] sm:$0xff] 0.0
      %86 = vst [vmem:[#allocation8 + $0xb0] sm:$0xff] 0.0
      %87 = vst [vmem:[#allocation8 + $0xb8] sm:$0xff] 0.0
      %88 = vst [vmem:[#allocation8 + $0xc0] sm:$0xff] 0.0
      %89 = vst [vmem:[#allocation8 + $0xc8] sm:$0xff] 0.0
      %90 = vst [vmem:[#allocation8 + $0xd0] sm:$0xff] 0.0
      %91 = vst [vmem:[#allocation8 + $0xd8] sm:$0xff] 0.0
      %92 = vst [vmem:[#allocation8 + $0xe0] sm:$0xff] 0.0
      %93 = vst [vmem:[#allocation8 + $0xe8] sm:$0xff] 0.0
      %94 = vst [vmem:[#allocation8 + $0xf0] sm:$0xff] 0.0
      %95 = vst [vmem:[#allocation8 + $0xf8] sm:$0xff] 0.0
      %96 = vst [vmem:[#allocation8 + $0x100] sm:$0xff] 0.0
      %97 = vst [vmem:[#allocation8 + $0x108] sm:$0xff] 0.0
      %98 = vst [vmem:[#allocation8 + $0x110] sm:$0xff] 0.0
      %99 = vst [vmem:[#allocation8 + $0x118] sm:$0xff] 0.0
      %100 = vst [vmem:[#allocation8 + $0x120] sm:$0xff] 0.0
      %101 = vst [vmem:[#allocation8 + $0x128] sm:$0xff] 0.0
      %102 = vst [vmem:[#allocation8 + $0x130] sm:$0xff] 0.0
      %103 = vst [vmem:[#allocation8 + $0x138] sm:$0xff] 0.0
      %104 = vst [vmem:[#allocation8 + $0x140] sm:$0xff] 0.0
      %105 = vst [vmem:[#allocation8 + $0x148] sm:$0xff] 0.0
      %106 = vst [vmem:[#allocation8 + $0x150] sm:$0xff] 0.0
      %107 = vst [vmem:[#allocation8 + $0x158] sm:$0xff] 0.0
      %108 = vst [vmem:[#allocation8 + $0x160] sm:$0xff] 0.0
      %109 = vst [vmem:[#allocation8 + $0x168] sm:$0xff] 0.0
      %110 = vst [vmem:[#allocation8 + $0x170] sm:$0xff] 0.0
      %111 = vst [vmem:[#allocation8 + $0x178] sm:$0xff] 0.0
      %112 = vst [vmem:[#allocation8 + $0x180] sm:$0xff] 0.0
      %113 = vst [vmem:[#allocation8 + $0x188] sm:$0xff] 0.0
      %114 = vst [vmem:[#allocation8 + $0x190] sm:$0xff] 0.0
      %115 = vst [vmem:[#allocation8 + $0x198] sm:$0xff] 0.0
      %116 = vst [vmem:[#allocation8 + $0x1a0] sm:$0xff] 0.0
      %117 = vst [vmem:[#allocation8 + $0x1a8] sm:$0xff] 0.0
      %118 = vst [vmem:[#allocation8 + $0x1b0] sm:$0xff] 0.0
      %119 = vst [vmem:[#allocation8 + $0x1b8] sm:$0xff] 0.0
      %120 = vst [vmem:[#allocation8 + $0x1c0] sm:$0xff] 0.0
      %121 = vst [vmem:[#allocation8 + $0x1c8] sm:$0xff] 0.0
      %122 = vst [vmem:[#allocation8 + $0x1d0] sm:$0xff] 0.0
      %123 = vst [vmem:[#allocation8 + $0x1d8] sm:$0xff] 0.0
      %124 = vst [vmem:[#allocation8 + $0x1e0] sm:$0xff] 0.0
      %125 = vst [vmem:[#allocation8 + $0x1e8] sm:$0xff] 0.0
      %126 = vst [vmem:[#allocation8 + $0x1f0] sm:$0xff] 0.0
      %127 = vst [vmem:[#allocation8 + $0x1f8] sm:$0xff] 0.0
      %128 = vst [vmem:[#allocation9] sm:$0xff] 0.0
      %129 = vst [vmem:[#allocation9 + $0x8] sm:$0xff] 0.0
      %130 = vst [vmem:[#allocation9 + $0x10] sm:$0xff] 0.0
      %131 = vst [vmem:[#allocation9 + $0x18] sm:$0xff] 0.0
      %132 = vst [vmem:[#allocation9 + $0x20] sm:$0xff] 0.0
      %133 = vst [vmem:[#allocation9 + $0x28] sm:$0xff] 0.0
      %134 = vst [vmem:[#allocation9 + $0x30] sm:$0xff] 0.0
      %135 = vst [vmem:[#allocation9 + $0x38] sm:$0xff] 0.0
      %136 = vst [vmem:[#allocation9 + $0x40] sm:$0xff] 0.0
      %137 = vst [vmem:[#allocation9 + $0x48] sm:$0xff] 0.0
      %138 = vst [vmem:[#allocation9 + $0x50] sm:$0xff] 0.0
      %139 = vst [vmem:[#allocation9 + $0x58] sm:$0xff] 0.0
      %140 = vst [vmem:[#allocation9 + $0x60] sm:$0xff] 0.0
      %141 = vst [vmem:[#allocation9 + $0x68] sm:$0xff] 0.0
      %142 = vst [vmem:[#allocation9 + $0x70] sm:$0xff] 0.0
      %143 = vst [vmem:[#allocation9 + $0x78] sm:$0xff] 0.0
      %144 = vst [vmem:[#allocation9 + $0x80] sm:$0xff] 0.0
      %145 = vst [vmem:[#allocation9 + $0x88] sm:$0xff] 0.0
      %146 = vst [vmem:[#allocation9 + $0x90] sm:$0xff] 0.0
      %147 = vst [vmem:[#allocation9 + $0x98] sm:$0xff] 0.0
      %148 = vst [vmem:[#allocation9 + $0xa0] sm:$0xff] 0.0
      %149 = vst [vmem:[#allocation9 + $0xa8] sm:$0xff] 0.0
      %150 = vst [vmem:[#allocation9 + $0xb0] sm:$0xff] 0.0
      %151 = vst [vmem:[#allocation9 + $0xb8] sm:$0xff] 0.0
      %152 = vst [vmem:[#allocation9 + $0xc0] sm:$0xff] 0.0
      %153 = vst [vmem:[#allocation9 + $0xc8] sm:$0xff] 0.0
      %154 = vst [vmem:[#allocation9 + $0xd0] sm:$0xff] 0.0
      %155 = vst [vmem:[#allocation9 + $0xd8] sm:$0xff] 0.0
      %156 = vst [vmem:[#allocation9 + $0xe0] sm:$0xff] 0.0
      %157 = vst [vmem:[#allocation9 + $0xe8] sm:$0xff] 0.0
      %158 = vst [vmem:[#allocation9 + $0xf0] sm:$0xff] 0.0
      %159 = vst [vmem:[#allocation9 + $0xf8] sm:$0xff] 0.0
      %160 = vst [vmem:[#allocation9 + $0x100] sm:$0xff] 0.0
      %161 = vst [vmem:[#allocation9 + $0x108] sm:$0xff] 0.0
      %162 = vst [vmem:[#allocation9 + $0x110] sm:$0xff] 0.0
      %163 = vst [vmem:[#allocation9 + $0x118] sm:$0xff] 0.0
      %164 = vst [vmem:[#allocation9 + $0x120] sm:$0xff] 0.0
      %165 = vst [vmem:[#allocation9 + $0x128] sm:$0xff] 0.0
      %166 = vst [vmem:[#allocation9 + $0x130] sm:$0xff] 0.0
      %167 = vst [vmem:[#allocation9 + $0x138] sm:$0xff] 0.0
      %168 = vst [vmem:[#allocation9 + $0x140] sm:$0xff] 0.0
      %169 = vst [vmem:[#allocation9 + $0x148] sm:$0xff] 0.0
      %170 = vst [vmem:[#allocation9 + $0x150] sm:$0xff] 0.0
      %171 = vst [vmem:[#allocation9 + $0x158] sm:$0xff] 0.0
      %172 = vst [vmem:[#allocation9 + $0x160] sm:$0xff] 0.0
      %173 = vst [vmem:[#allocation9 + $0x168] sm:$0xff] 0.0
      %174 = vst [vmem:[#allocation9 + $0x170] sm:$0xff] 0.0
      %175 = vst [vmem:[#allocation9 + $0x178] sm:$0xff] 0.0
      %176 = vst [vmem:[#allocation9 + $0x180] sm:$0xff] 0.0
      %177 = vst [vmem:[#allocation9 + $0x188] sm:$0xff] 0.0
      %178 = vst [vmem:[#allocation9 + $0x190] sm:$0xff] 0.0
      %179 = vst [vmem:[#allocation9 + $0x198] sm:$0xff] 0.0
      %180 = vst [vmem:[#allocation9 + $0x1a0] sm:$0xff] 0.0
      %181 = vst [vmem:[#allocation9 + $0x1a8] sm:$0xff] 0.0
      %182 = vst [vmem:[#allocation9 + $0x1b0] sm:$0xff] 0.0
      %183 = vst [vmem:[#allocation9 + $0x1b8] sm:$0xff] 0.0
      %184 = vst [vmem:[#allocation9 + $0x1c0] sm:$0xff] 0.0
      %185 = vst [vmem:[#allocation9 + $0x1c8] sm:$0xff] 0.0
      %186 = vst [vmem:[#allocation9 + $0x1d0] sm:$0xff] 0.0
      %187 = vst [vmem:[#allocation9 + $0x1d8] sm:$0xff] 0.0
      %188 = vst [vmem:[#allocation9 + $0x1e0] sm:$0xff] 0.0
      %189 = vst [vmem:[#allocation9 + $0x1e8] sm:$0xff] 0.0
      %190 = vst [vmem:[#allocation9 + $0x1f0] sm:$0xff] 0.0
      %191 = vst [vmem:[#allocation9 + $0x1f8] sm:$0xff] 0.0
      %192 = vst [vmem:[#allocation11] sm:$0xff] 0.0
      %193 = vst [vmem:[#allocation11 + $0x8] sm:$0xff] 0.0
      %194 = vst [vmem:[#allocation11 + $0x10] sm:$0xff] 0.0
      %195 = vst [vmem:[#allocation11 + $0x18] sm:$0xff] 0.0
      %196 = vst [vmem:[#allocation11 + $0x20] sm:$0xff] 0.0
      %197 = vst [vmem:[#allocation11 + $0x28] sm:$0xff] 0.0
      %198 = vst [vmem:[#allocation11 + $0x30] sm:$0xff] 0.0
      %199 = vst [vmem:[#allocation11 + $0x38] sm:$0xff] 0.0
      %200 = vst [vmem:[#allocation11 + $0x40] sm:$0xff] 0.0
      %201 = vst [vmem:[#allocation11 + $0x48] sm:$0xff] 0.0
      %202 = vst [vmem:[#allocation11 + $0x50] sm:$0xff] 0.0
      %203 = vst [vmem:[#allocation11 + $0x58] sm:$0xff] 0.0
      %204 = vst [vmem:[#allocation11 + $0x60] sm:$0xff] 0.0
      %205 = vst [vmem:[#allocation11 + $0x68] sm:$0xff] 0.0
      %206 = vst [vmem:[#allocation11 + $0x70] sm:$0xff] 0.0
      %207 = vst [vmem:[#allocation11 + $0x78] sm:$0xff] 0.0
      %208 = vst [vmem:[#allocation11 + $0x80] sm:$0xff] 0.0
      %209 = vst [vmem:[#allocation11 + $0x88] sm:$0xff] 0.0
      %210 = vst [vmem:[#allocation11 + $0x90] sm:$0xff] 0.0
      %211 = vst [vmem:[#allocation11 + $0x98] sm:$0xff] 0.0
      %212 = vst [vmem:[#allocation11 + $0xa0] sm:$0xff] 0.0
      %213 = vst [vmem:[#allocation11 + $0xa8] sm:$0xff] 0.0
      %214 = vst [vmem:[#allocation11 + $0xb0] sm:$0xff] 0.0
      %215 = vst [vmem:[#allocation11 + $0xb8] sm:$0xff] 0.0
      %216 = vst [vmem:[#allocation11 + $0xc0] sm:$0xff] 0.0
      %217 = vst [vmem:[#allocation11 + $0xc8] sm:$0xff] 0.0
      %218 = vst [vmem:[#allocation11 + $0xd0] sm:$0xff] 0.0
      %219 = vst [vmem:[#allocation11 + $0xd8] sm:$0xff] 0.0
      %220 = vst [vmem:[#allocation11 + $0xe0] sm:$0xff] 0.0
      %221 = vst [vmem:[#allocation11 + $0xe8] sm:$0xff] 0.0
      %222 = vst [vmem:[#allocation11 + $0xf0] sm:$0xff] 0.0
      %223 = vst [vmem:[#allocation11 + $0xf8] sm:$0xff] 0.0
      %224 = vst [vmem:[#allocation11 + $0x100] sm:$0xff] 0.0
      %225 = vst [vmem:[#allocation11 + $0x108] sm:$0xff] 0.0
      %226 = vst [vmem:[#allocation11 + $0x110] sm:$0xff] 0.0
      %227 = vst [vmem:[#allocation11 + $0x118] sm:$0xff] 0.0
      %228 = vst [vmem:[#allocation11 + $0x120] sm:$0xff] 0.0
      %229 = vst [vmem:[#allocation11 + $0x128] sm:$0xff] 0.0
      %230 = vst [vmem:[#allocation11 + $0x130] sm:$0xff] 0.0
      %231 = vst [vmem:[#allocation11 + $0x138] sm:$0xff] 0.0
      %232 = vst [vmem:[#allocation11 + $0x140] sm:$0xff] 0.0
      %233 = vst [vmem:[#allocation11 + $0x148] sm:$0xff] 0.0
      %234 = vst [vmem:[#allocation11 + $0x150] sm:$0xff] 0.0
      %235 = vst [vmem:[#allocation11 + $0x158] sm:$0xff] 0.0
      %236 = vst [vmem:[#allocation11 + $0x160] sm:$0xff] 0.0
      %237 = vst [vmem:[#allocation11 + $0x168] sm:$0xff] 0.0
      %238 = vst [vmem:[#allocation11 + $0x170] sm:$0xff] 0.0
      %239 = vst [vmem:[#allocation11 + $0x178] sm:$0xff] 0.0
      %240 = vst [vmem:[#allocation11 + $0x180] sm:$0xff] 0.0
      %241 = vst [vmem:[#allocation11 + $0x188] sm:$0xff] 0.0
      %242 = vst [vmem:[#allocation11 + $0x190] sm:$0xff] 0.0
      %243 = vst [vmem:[#allocation11 + $0x198] sm:$0xff] 0.0
      %244 = vst [vmem:[#allocation11 + $0x1a0] sm:$0xff] 0.0
      %245 = vst [vmem:[#allocation11 + $0x1a8] sm:$0xff] 0.0
      %246 = vst [vmem:[#allocation11 + $0x1b0] sm:$0xff] 0.0
      %247 = vst [vmem:[#allocation11 + $0x1b8] sm:$0xff] 0.0
      %248 = vst [vmem:[#allocation11 + $0x1c0] sm:$0xff] 0.0
      %249 = vst [vmem:[#allocation11 + $0x1c8] sm:$0xff] 0.0
      %250 = vst [vmem:[#allocation11 + $0x1d0] sm:$0xff] 0.0
      %251 = vst [vmem:[#allocation11 + $0x1d8] sm:$0xff] 0.0
      %252 = vst [vmem:[#allocation11 + $0x1e0] sm:$0xff] 0.0
      %253 = vst [vmem:[#allocation11 + $0x1e8] sm:$0xff] 0.0
      %254 = vst [vmem:[#allocation11 + $0x1f0] sm:$0xff] 0.0
      %255 = vst [vmem:[#allocation11 + $0x1f8] sm:$0xff] 0.0
    $region29: #{tpu_custom_call.1} parent=1 // pred_fallthru
      _
    %v256 = vld [vmem:[#allocation8] sm:$0xff]
    %v257 = vld [vmem:[#allocation8 + $0x8] sm:$0xff]
    %v258 = vld [vmem:[#allocation8 + $0x10] sm:$0xff]
    %v259 = vld [vmem:[#allocation8 + $0x18] sm:$0xff]
    %v260 = vld [vmem:[#allocation8 + $0x20] sm:$0xff]
    %v261 = vld [vmem:[#allocation8 + $0x28] sm:$0xff]
    %v262 = vld [vmem:[#allocation8 + $0x30] sm:$0xff]
    %v263 = vld [vmem:[#allocation8 + $0x38] sm:$0xff]
    %v264 = vld [vmem:[#allocation8 + $0x40] sm:$0xff]
    %v265 = vld [vmem:[#allocation8 + $0x48] sm:$0xff]
    %v266 = vld [vmem:[#allocation8 + $0x50] sm:$0xff]
    %v267 = vld [vmem:[#allocation8 + $0x58] sm:$0xff]
    %v268 = vld [vmem:[#allocation8 + $0x60] sm:$0xff]
    %v269 = vld [vmem:[#allocation8 + $0x68] sm:$0xff]
    %v270 = vld [vmem:[#allocation8 + $0x70] sm:$0xff]
    %v271 = vld [vmem:[#allocation8 + $0x78] sm:$0xff]
    %v272 = vld [vmem:[#allocation8 + $0x80] sm:$0xff]
    %v273 = vld [vmem:[#allocation8 + $0x88] sm:$0xff]
    %v274 = vld [vmem:[#allocation8 + $0x90] sm:$0xff]
    %v275 = vld [vmem:[#allocation8 + $0x98] sm:$0xff]
    %v276 = vld [vmem:[#allocation8 + $0xa0] sm:$0xff]
    %v277 = vld [vmem:[#allocation8 + $0xa8] sm:$0xff]
    %v278 = vld [vmem:[#allocation8 + $0xb0] sm:$0xff]
    %v279 = vld [vmem:[#allocation8 + $0xb8] sm:$0xff]
    %v280 = vld [vmem:[#allocation8 + $0xc0] sm:$0xff]
    %v281 = vld [vmem:[#allocation8 + $0xc8] sm:$0xff]
    %v282 = vld [vmem:[#allocation8 + $0xd0] sm:$0xff]
    %v283 = vld [vmem:[#allocation8 + $0xd8] sm:$0xff]
    %v284 = vld [vmem:[#allocation8 + $0xe0] sm:$0xff]
    %v285 = vld [vmem:[#allocation8 + $0xe8] sm:$0xff]
    %v286 = vld [vmem:[#allocation8 + $0xf0] sm:$0xff]
    %v287 = vld [vmem:[#allocation8 + $0xf8] sm:$0xff]
    %v288 = vld [vmem:[#allocation8 + $0x100] sm:$0xff]
    %v289 = vld [vmem:[#allocation8 + $0x108] sm:$0xff]
    %v290 = vld [vmem:[#allocation8 + $0x110] sm:$0xff]
    %v291 = vld [vmem:[#allocation8 + $0x118] sm:$0xff]
    %v292 = vld [vmem:[#allocation8 + $0x120] sm:$0xff]
    %v293 = vld [vmem:[#allocation8 + $0x128] sm:$0xff]
    %v294 = vld [vmem:[#allocation8 + $0x130] sm:$0xff]
    %v295 = vld [vmem:[#allocation8 + $0x138] sm:$0xff]
    %v296 = vld [vmem:[#allocation8 + $0x140] sm:$0xff]
    %v297 = vld [vmem:[#allocation8 + $0x148] sm:$0xff]
    %v298 = vld [vmem:[#allocation8 + $0x150] sm:$0xff]
    %v299 = vld [vmem:[#allocation8 + $0x158] sm:$0xff]
    %v300 = vld [vmem:[#allocation8 + $0x160] sm:$0xff]
    %v301 = vld [vmem:[#allocation8 + $0x168] sm:$0xff]
    %v302 = vld [vmem:[#allocation8 + $0x170] sm:$0xff]
    %v303 = vld [vmem:[#allocation8 + $0x178] sm:$0xff]
    %v304 = vld [vmem:[#allocation8 + $0x180] sm:$0xff]
    %v305 = vld [vmem:[#allocation8 + $0x188] sm:$0xff]
    %v306 = vld [vmem:[#allocation8 + $0x190] sm:$0xff]
    %v307 = vld [vmem:[#allocation8 + $0x198] sm:$0xff]
    %v308 = vld [vmem:[#allocation8 + $0x1a0] sm:$0xff]
    %v309 = vld [vmem:[#allocation8 + $0x1a8] sm:$0xff]
    %v310 = vld [vmem:[#allocation8 + $0x1b0] sm:$0xff]
    %v311 = vld [vmem:[#allocation8 + $0x1b8] sm:$0xff]
    %v312 = vld [vmem:[#allocation8 + $0x1c0] sm:$0xff]
    %v313 = vld [vmem:[#allocation8 + $0x1c8] sm:$0xff]
    %v314 = vld [vmem:[#allocation8 + $0x1d0] sm:$0xff]
    %v315 = vld [vmem:[#allocation8 + $0x1d8] sm:$0xff]
    %v316 = vld [vmem:[#allocation8 + $0x1e0] sm:$0xff]
    %v317 = vld [vmem:[#allocation8 + $0x1e8] sm:$0xff]
    %v318 = vld [vmem:[#allocation8 + $0x1f0] sm:$0xff]
    %v319 = vld [vmem:[#allocation8 + $0x1f8] sm:$0xff]
    %v320 = vld [vmem:[#allocation2] sm:$0xff]
    %v321 = vld [vmem:[#allocation2 + $0x10] sm:$0xff]
    %v322 = vld [vmem:[#allocation2 + $0x20] sm:$0xff]
    %v323 = vld [vmem:[#allocation2 + $0x30] sm:$0xff]
    %v324 = vld [vmem:[#allocation2 + $0x40] sm:$0xff]
    %v325 = vld [vmem:[#allocation2 + $0x50] sm:$0xff]
    %v326 = vld [vmem:[#allocation2 + $0x60] sm:$0xff]
    %v327 = vld [vmem:[#allocation2 + $0x70] sm:$0xff]
    %v328 = vld [vmem:[#allocation2 + $0x80] sm:$0xff]
    %v329 = vld [vmem:[#allocation2 + $0x90] sm:$0xff]
    %v330 = vld [vmem:[#allocation2 + $0xa0] sm:$0xff]
    %v331 = vld [vmem:[#allocation2 + $0xb0] sm:$0xff]
    %v332 = vld [vmem:[#allocation2 + $0xc0] sm:$0xff]
    %v333 = vld [vmem:[#allocation2 + $0xd0] sm:$0xff]
    %v334 = vld [vmem:[#allocation2 + $0xe0] sm:$0xff]
    %v335 = vld [vmem:[#allocation2 + $0xf0] sm:$0xff]
    %v336 = vld [vmem:[#allocation2 + $0x100] sm:$0xff]
    %v337 = vld [vmem:[#allocation2 + $0x110] sm:$0xff]
    %v338 = vld [vmem:[#allocation2 + $0x120] sm:$0xff]
    %v339 = vld [vmem:[#allocation2 + $0x130] sm:$0xff]
    %v340 = vld [vmem:[#allocation2 + $0x140] sm:$0xff]
    %v341 = vld [vmem:[#allocation2 + $0x150] sm:$0xff]
    %v342 = vld [vmem:[#allocation2 + $0x160] sm:$0xff]
    %v343 = vld [vmem:[#allocation2 + $0x170] sm:$0xff]
    %v344 = vld [vmem:[#allocation2 + $0x180] sm:$0xff]
    %v345 = vld [vmem:[#allocation2 + $0x190] sm:$0xff]
    %v346 = vld [vmem:[#allocation2 + $0x1a0] sm:$0xff]
    %v347 = vld [vmem:[#allocation2 + $0x1b0] sm:$0xff]
    %v348 = vld [vmem:[#allocation2 + $0x1c0] sm:$0xff]
    %v349 = vld [vmem:[#allocation2 + $0x1d0] sm:$0xff]
    %v350 = vld [vmem:[#allocation2 + $0x1e0] sm:$0xff]
    %v351 = vld [vmem:[#allocation2 + $0x1f0] sm:$0xff]
    %v352 = vld [vmem:[#allocation2 + $0x200] sm:$0xff]
    %v353 = vld [vmem:[#allocation2 + $0x210] sm:$0xff]
    %v354 = vld [vmem:[#allocation2 + $0x220] sm:$0xff]
    %v355 = vld [vmem:[#allocation2 + $0x230] sm:$0xff]
    %v356 = vld [vmem:[#allocation2 + $0x240] sm:$0xff]
    %v357 = vld [vmem:[#allocation2 + $0x250] sm:$0xff]
    %v358 = vld [vmem:[#allocation2 + $0x260] sm:$0xff]
    %v359 = vld [vmem:[#allocation2 + $0x270] sm:$0xff]
    %v360 = vld [vmem:[#allocation2 + $0x280] sm:$0xff]
    %v361 = vld [vmem:[#allocation2 + $0x290] sm:$0xff]
    %v362 = vld [vmem:[#allocation2 + $0x2a0] sm:$0xff]
    %v363 = vld [vmem:[#allocation2 + $0x2b0] sm:$0xff]
    %v364 = vld [vmem:[#allocation2 + $0x2c0] sm:$0xff]
    %v365 = vld [vmem:[#allocation2 + $0x2d0] sm:$0xff]
    %v366 = vld [vmem:[#allocation2 + $0x2e0] sm:$0xff]
    %v367 = vld [vmem:[#allocation2 + $0x2f0] sm:$0xff]
    %v368 = vld [vmem:[#allocation2 + $0x300] sm:$0xff]
    %v369 = vld [vmem:[#allocation2 + $0x310] sm:$0xff]
    %v370 = vld [vmem:[#allocation2 + $0x320] sm:$0xff]
    %v371 = vld [vmem:[#allocation2 + $0x330] sm:$0xff]
    %v372 = vld [vmem:[#allocation2 + $0x340] sm:$0xff]
    %v373 = vld [vmem:[#allocation2 + $0x350] sm:$0xff]
    %v374 = vld [vmem:[#allocation2 + $0x360] sm:$0xff]
    %v375 = vld [vmem:[#allocation2 + $0x370] sm:$0xff]
    %v376 = vld [vmem:[#allocation2 + $0x380] sm:$0xff]
    %v377 = vld [vmem:[#allocation2 + $0x390] sm:$0xff]
    %v378 = vld [vmem:[#allocation2 + $0x3a0] sm:$0xff]
    %v379 = vld [vmem:[#allocation2 + $0x3b0] sm:$0xff]
    %v380 = vld [vmem:[#allocation2 + $0x3c0] sm:$0xff]
    %v381 = vld [vmem:[#allocation2 + $0x3d0] sm:$0xff]
    %v382 = vld [vmem:[#allocation2 + $0x3e0] sm:$0xff]
    %v383 = vld [vmem:[#allocation2 + $0x3f0] sm:$0xff]
    %v384 = vld [vmem:[#allocation2 + $0x8] sm:$0xff]
    %v385 = vld [vmem:[#allocation2 + $0x18] sm:$0xff]
    %v386 = vld [vmem:[#allocation2 + $0x28] sm:$0xff]
    %v387 = vld [vmem:[#allocation2 + $0x38] sm:$0xff]
    %v388 = vld [vmem:[#allocation2 + $0x48] sm:$0xff]
    %v389 = vld [vmem:[#allocation2 + $0x58] sm:$0xff]
    %v390 = vld [vmem:[#allocation2 + $0x68] sm:$0xff]
    %v391 = vld [vmem:[#allocation2 + $0x78] sm:$0xff]
    %v392 = vld [vmem:[#allocation2 + $0x88] sm:$0xff]
    %v393 = vld [vmem:[#allocation2 + $0x98] sm:$0xff]
    %v394 = vld [vmem:[#allocation2 + $0xa8] sm:$0xff]
    %v395 = vld [vmem:[#allocation2 + $0xb8] sm:$0xff]
    %v396 = vld [vmem:[#allocation2 + $0xc8] sm:$0xff]
    %v397 = vld [vmem:[#allocation2 + $0xd8] sm:$0xff]
    %v398 = vld [vmem:[#allocation2 + $0xe8] sm:$0xff]
    %v399 = vld [vmem:[#allocation2 + $0xf8] sm:$0xff]
    %v400 = vld [vmem:[#allocation2 + $0x108] sm:$0xff]
    %v401 = vld [vmem:[#allocation2 + $0x118] sm:$0xff]
    %v402 = vld [vmem:[#allocation2 + $0x128] sm:$0xff]
    %v403 = vld [vmem:[#allocation2 + $0x138] sm:$0xff]
    %v404 = vld [vmem:[#allocation2 + $0x148] sm:$0xff]
    %v405 = vld [vmem:[#allocation2 + $0x158] sm:$0xff]
    %v406 = vld [vmem:[#allocation2 + $0x168] sm:$0xff]
    %v407 = vld [vmem:[#allocation2 + $0x178] sm:$0xff]
    %v408 = vld [vmem:[#allocation2 + $0x188] sm:$0xff]
    %v409 = vld [vmem:[#allocation2 + $0x198] sm:$0xff]
    %v410 = vld [vmem:[#allocation2 + $0x1a8] sm:$0xff]
    %v411 = vld [vmem:[#allocation2 + $0x1b8] sm:$0xff]
    %v412 = vld [vmem:[#allocation2 + $0x1c8] sm:$0xff]
    %v413 = vld [vmem:[#allocation2 + $0x1d8] sm:$0xff]
    %v414 = vld [vmem:[#allocation2 + $0x1e8] sm:$0xff]
    %v415 = vld [vmem:[#allocation2 + $0x1f8] sm:$0xff]
    %v416 = vld [vmem:[#allocation2 + $0x208] sm:$0xff]
    %v417 = vld [vmem:[#allocation2 + $0x218] sm:$0xff]
    %v418 = vld [vmem:[#allocation2 + $0x228] sm:$0xff]
    %v419 = vld [vmem:[#allocation2 + $0x238] sm:$0xff]
    %v420 = vld [vmem:[#allocation2 + $0x248] sm:$0xff]
    %v421 = vld [vmem:[#allocation2 + $0x258] sm:$0xff]
    %v422 = vld [vmem:[#allocation2 + $0x268] sm:$0xff]
    %v423 = vld [vmem:[#allocation2 + $0x278] sm:$0xff]
    %v424 = vld [vmem:[#allocation2 + $0x288] sm:$0xff]
    %v425 = vld [vmem:[#allocation2 + $0x298] sm:$0xff]
    %v426 = vld [vmem:[#allocation2 + $0x2a8] sm:$0xff]
    %v427 = vld [vmem:[#allocation2 + $0x2b8] sm:$0xff]
    %v428 = vld [vmem:[#allocation2 + $0x2c8] sm:$0xff]
    %v429 = vld [vmem:[#allocation2 + $0x2d8] sm:$0xff]
    %v430 = vld [vmem:[#allocation2 + $0x2e8] sm:$0xff]
    %v431 = vld [vmem:[#allocation2 + $0x2f8] sm:$0xff]
    %v432 = vld [vmem:[#allocation2 + $0x308] sm:$0xff]
    %v433 = vld [vmem:[#allocation2 + $0x318] sm:$0xff]
    %v434 = vld [vmem:[#allocation2 + $0x328] sm:$0xff]
    %v435 = vld [vmem:[#allocation2 + $0x338] sm:$0xff]
    %v436 = vld [vmem:[#allocation2 + $0x348] sm:$0xff]
    %v437 = vld [vmem:[#allocation2 + $0x358] sm:$0xff]
    %v438 = vld [vmem:[#allocation2 + $0x368] sm:$0xff]
    %v439 = vld [vmem:[#allocation2 + $0x378] sm:$0xff]
    %v440 = vld [vmem:[#allocation2 + $0x388] sm:$0xff]
    %v441 = vld [vmem:[#allocation2 + $0x398] sm:$0xff]
    %v442 = vld [vmem:[#allocation2 + $0x3a8] sm:$0xff]
    %v443 = vld [vmem:[#allocation2 + $0x3b8] sm:$0xff]
    %v444 = vld [vmem:[#allocation2 + $0x3c8] sm:$0xff]
    %v445 = vld [vmem:[#allocation2 + $0x3d8] sm:$0xff]
    %v446 = vld [vmem:[#allocation2 + $0x3e8] sm:$0xff]
    %v447 = vld [vmem:[#allocation2 + $0x3f8] sm:$0xff]
    %v448 = vadd.f32 %v320, %v384
    %v449 = vadd.f32 %v321, %v385
    %v450 = vadd.f32 %v322, %v386
    %v451 = vadd.f32 %v323, %v387
    %v452 = vadd.f32 %v324, %v388
    %v453 = vadd.f32 %v325, %v389
    %v454 = vadd.f32 %v326, %v390
    %v455 = vadd.f32 %v327, %v391
    %v456 = vadd.f32 %v328, %v392
    %v457 = vadd.f32 %v329, %v393
    %v458 = vadd.f32 %v330, %v394
    %v459 = vadd.f32 %v331, %v395
    %v460 = vadd.f32 %v332, %v396
    %v461 = vadd.f32 %v333, %v397
    %v462 = vadd.f32 %v334, %v398
    %v463 = vadd.f32 %v335, %v399
    %v464 = vadd.f32 %v336, %v400
    %v465 = vadd.f32 %v337, %v401
    %v466 = vadd.f32 %v338, %v402
    %v467 = vadd.f32 %v339, %v403
    %v468 = vadd.f32 %v340, %v404
    %v469 = vadd.f32 %v341, %v405
    %v470 = vadd.f32 %v342, %v406
    %v471 = vadd.f32 %v343, %v407
    %v472 = vadd.f32 %v344, %v408
    %v473 = vadd.f32 %v345, %v409
    %v474 = vadd.f32 %v346, %v410
    %v475 = vadd.f32 %v347, %v411
    %v476 = vadd.f32 %v348, %v412
    %v477 = vadd.f32 %v349, %v413
    %v478 = vadd.f32 %v350, %v414
    %v479 = vadd.f32 %v351, %v415
    %v480 = vadd.f32 %v352, %v416
    %v481 = vadd.f32 %v353, %v417
    %v482 = vadd.f32 %v354, %v418
    %v483 = vadd.f32 %v355, %v419
    %v484 = vadd.f32 %v356, %v420
    %v485 = vadd.f32 %v357, %v421
    %v486 = vadd.f32 %v358, %v422
    %v487 = vadd.f32 %v359, %v423
    %v488 = vadd.f32 %v360, %v424
    %v489 = vadd.f32 %v361, %v425
    %v490 = vadd.f32 %v362, %v426
    %v491 = vadd.f32 %v363, %v427
    %v492 = vadd.f32 %v364, %v428
    %v493 = vadd.f32 %v365, %v429
    %v494 = vadd.f32 %v366, %v430
    %v495 = vadd.f32 %v367, %v431
    %v496 = vadd.f32 %v368, %v432
    %v497 = vadd.f32 %v369, %v433
    %v498 = vadd.f32 %v370, %v434
    %v499 = vadd.f32 %v371, %v435
    %v500 = vadd.f32 %v372, %v436
    %v501 = vadd.f32 %v373, %v437
    %v502 = vadd.f32 %v374, %v438
    %v503 = vadd.f32 %v375, %v439
    %v504 = vadd.f32 %v376, %v440
    %v505 = vadd.f32 %v377, %v441
    %v506 = vadd.f32 %v378, %v442
    %v507 = vadd.f32 %v379, %v443
    %v508 = vadd.f32 %v380, %v444
    %v509 = vadd.f32 %v381, %v445
    %v510 = vadd.f32 %v382, %v446
    %v511 = vadd.f32 %v383, %v447
    %v512 = vadd.f32 %v256, %v448
    %v513 = vadd.f32 %v257, %v449
    %v514 = vadd.f32 %v258, %v450
    %v515 = vadd.f32 %v259, %v451
    %v516 = vadd.f32 %v260, %v452
    %v517 = vadd.f32 %v261, %v453
    %v518 = vadd.f32 %v262, %v454
    %v519 = vadd.f32 %v263, %v455
    %v520 = vadd.f32 %v264, %v456
    %v521 = vadd.f32 %v265, %v457
    %v522 = vadd.f32 %v266, %v458
    %v523 = vadd.f32 %v267, %v459
    %v524 = vadd.f32 %v268, %v460
    %v525 = vadd.f32 %v269, %v461
    %v526 = vadd.f32 %v270, %v462
    %v527 = vadd.f32 %v271, %v463
    %v528 = vadd.f32 %v272, %v464
    %v529 = vadd.f32 %v273, %v465
    %v530 = vadd.f32 %v274, %v466
    %v531 = vadd.f32 %v275, %v467
    %v532 = vadd.f32 %v276, %v468
    %v533 = vadd.f32 %v277, %v469
    %v534 = vadd.f32 %v278, %v470
    %v535 = vadd.f32 %v279, %v471
    %v536 = vadd.f32 %v280, %v472
    %v537 = vadd.f32 %v281, %v473
    %v538 = vadd.f32 %v282, %v474
    %v539 = vadd.f32 %v283, %v475
    %v540 = vadd.f32 %v284, %v476
    %v541 = vadd.f32 %v285, %v477
    %v542 = vadd.f32 %v286, %v478
    %v543 = vadd.f32 %v287, %v479
    %v544 = vadd.f32 %v288, %v480
    %v545 = vadd.f32 %v289, %v481
    %v546 = vadd.f32 %v290, %v482
    %v547 = vadd.f32 %v291, %v483
    %v548 = vadd.f32 %v292, %v484
    %v549 = vadd.f32 %v293, %v485
    %v550 = vadd.f32 %v294, %v486
    %v551 = vadd.f32 %v295, %v487
    %v552 = vadd.f32 %v296, %v488
    %v553 = vadd.f32 %v297, %v489
    %v554 = vadd.f32 %v298, %v490
    %v555 = vadd.f32 %v299, %v491
    %v556 = vadd.f32 %v300, %v492
    %v557 = vadd.f32 %v301, %v493
    %v558 = vadd.f32 %v302, %v494
    %v559 = vadd.f32 %v303, %v495
    %v560 = vadd.f32 %v304, %v496
    %v561 = vadd.f32 %v305, %v497
    %v562 = vadd.f32 %v306, %v498
    %v563 = vadd.f32 %v307, %v499
    %v564 = vadd.f32 %v308, %v500
    %v565 = vadd.f32 %v309, %v501
    %v566 = vadd.f32 %v310, %v502
    %v567 = vadd.f32 %v311, %v503
    %v568 = vadd.f32 %v312, %v504
    %v569 = vadd.f32 %v313, %v505
    %v570 = vadd.f32 %v314, %v506
    %v571 = vadd.f32 %v315, %v507
    %v572 = vadd.f32 %v316, %v508
    %v573 = vadd.f32 %v317, %v509
    %v574 = vadd.f32 %v318, %v510
    %v575 = vadd.f32 %v319, %v511
    %576 = vst [vmem:[#allocation8] sm:$0xff] %v512
    %577 = vst [vmem:[#allocation8 + $0x8] sm:$0xff] %v513
    %578 = vst [vmem:[#allocation8 + $0x10] sm:$0xff] %v514
    %579 = vst [vmem:[#allocation8 + $0x18] sm:$0xff] %v515
    %580 = vst [vmem:[#allocation8 + $0x20] sm:$0xff] %v516
    %581 = vst [vmem:[#allocation8 + $0x28] sm:$0xff] %v517
    %582 = vst [vmem:[#allocation8 + $0x30] sm:$0xff] %v518
    %583 = vst [vmem:[#allocation8 + $0x38] sm:$0xff] %v519
    %584 = vst [vmem:[#allocation8 + $0x40] sm:$0xff] %v520
    %585 = vst [vmem:[#allocation8 + $0x48] sm:$0xff] %v521
    %586 = vst [vmem:[#allocation8 + $0x50] sm:$0xff] %v522
    %587 = vst [vmem:[#allocation8 + $0x58] sm:$0xff] %v523
    %588 = vst [vmem:[#allocation8 + $0x60] sm:$0xff] %v524
    %589 = vst [vmem:[#allocation8 + $0x68] sm:$0xff] %v525
    %590 = vst [vmem:[#allocation8 + $0x70] sm:$0xff] %v526
    %591 = vst [vmem:[#allocation8 + $0x78] sm:$0xff] %v527
    %592 = vst [vmem:[#allocation8 + $0x80] sm:$0xff] %v528
    %593 = vst [vmem:[#allocation8 + $0x88] sm:$0xff] %v529
    %594 = vst [vmem:[#allocation8 + $0x90] sm:$0xff] %v530
    %595 = vst [vmem:[#allocation8 + $0x98] sm:$0xff] %v531
    %596 = vst [vmem:[#allocation8 + $0xa0] sm:$0xff] %v532
    %597 = vst [vmem:[#allocation8 + $0xa8] sm:$0xff] %v533
    %598 = vst [vmem:[#allocation8 + $0xb0] sm:$0xff] %v534
    %599 = vst [vmem:[#allocation8 + $0xb8] sm:$0xff] %v535
    %600 = vst [vmem:[#allocation8 + $0xc0] sm:$0xff] %v536
    %601 = vst [vmem:[#allocation8 + $0xc8] sm:$0xff] %v537
    %602 = vst [vmem:[#allocation8 + $0xd0] sm:$0xff] %v538
    %603 = vst [vmem:[#allocation8 + $0xd8] sm:$0xff] %v539
    %604 = vst [vmem:[#allocation8 + $0xe0] sm:$0xff] %v540
    %605 = vst [vmem:[#allocation8 + $0xe8] sm:$0xff] %v541
    %606 = vst [vmem:[#allocation8 + $0xf0] sm:$0xff] %v542
    %607 = vst [vmem:[#allocation8 + $0xf8] sm:$0xff] %v543
    %608 = vst [vmem:[#allocation8 + $0x100] sm:$0xff] %v544
    %609 = vst [vmem:[#allocation8 + $0x108] sm:$0xff] %v545
    %610 = vst [vmem:[#allocation8 + $0x110] sm:$0xff] %v546
    %611 = vst [vmem:[#allocation8 + $0x118] sm:$0xff] %v547
    %612 = vst [vmem:[#allocation8 + $0x120] sm:$0xff] %v548
    %613 = vst [vmem:[#allocation8 + $0x128] sm:$0xff] %v549
    %614 = vst [vmem:[#allocation8 + $0x130] sm:$0xff] %v550
    %615 = vst [vmem:[#allocation8 + $0x138] sm:$0xff] %v551
    %616 = vst [vmem:[#allocation8 + $0x140] sm:$0xff] %v552
    %617 = vst [vmem:[#allocation8 + $0x148] sm:$0xff] %v553
    %618 = vst [vmem:[#allocation8 + $0x150] sm:$0xff] %v554
    %619 = vst [vmem:[#allocation8 + $0x158] sm:$0xff] %v555
    %620 = vst [vmem:[#allocation8 + $0x160] sm:$0xff] %v556
    %621 = vst [vmem:[#allocation8 + $0x168] sm:$0xff] %v557
    %622 = vst [vmem:[#allocation8 + $0x170] sm:$0xff] %v558
    %623 = vst [vmem:[#allocation8 + $0x178] sm:$0xff] %v559
    %624 = vst [vmem:[#allocation8 + $0x180] sm:$0xff] %v560
    %625 = vst [vmem:[#allocation8 + $0x188] sm:$0xff] %v561
    %626 = vst [vmem:[#allocation8 + $0x190] sm:$0xff] %v562
    %627 = vst [vmem:[#allocation8 + $0x198] sm:$0xff] %v563
    %628 = vst [vmem:[#allocation8 + $0x1a0] sm:$0xff] %v564
    %629 = vst [vmem:[#allocation8 + $0x1a8] sm:$0xff] %v565
    %630 = vst [vmem:[#allocation8 + $0x1b0] sm:$0xff] %v566
    %631 = vst [vmem:[#allocation8 + $0x1b8] sm:$0xff] %v567
    %632 = vst [vmem:[#allocation8 + $0x1c0] sm:$0xff] %v568
    %633 = vst [vmem:[#allocation8 + $0x1c8] sm:$0xff] %v569
    %634 = vst [vmem:[#allocation8 + $0x1d0] sm:$0xff] %v570
    %635 = vst [vmem:[#allocation8 + $0x1d8] sm:$0xff] %v571
    %636 = vst [vmem:[#allocation8 + $0x1e0] sm:$0xff] %v572
    %637 = vst [vmem:[#allocation8 + $0x1e8] sm:$0xff] %v573
    %638 = vst [vmem:[#allocation8 + $0x1f0] sm:$0xff] %v574
    %639 = vst [vmem:[#allocation8 + $0x1f8] sm:$0xff] %v575
    %v640 = vld [vmem:[#allocation9] sm:$0xff]
    %v641 = vld [vmem:[#allocation9 + $0x8] sm:$0xff]
    %v642 = vld [vmem:[#allocation9 + $0x10] sm:$0xff]
    %v643 = vld [vmem:[#allocation9 + $0x18] sm:$0xff]
    %v644 = vld [vmem:[#allocation9 + $0x20] sm:$0xff]
    %v645 = vld [vmem:[#allocation9 + $0x28] sm:$0xff]
    %v646 = vld [vmem:[#allocation9 + $0x30] sm:$0xff]
    %v647 = vld [vmem:[#allocation9 + $0x38] sm:$0xff]
    %v648 = vld [vmem:[#allocation9 + $0x40] sm:$0xff]
    %v649 = vld [vmem:[#allocation9 + $0x48] sm:$0xff]
    %v650 = vld [vmem:[#allocation9 + $0x50] sm:$0xff]
    %v651 = vld [vmem:[#allocation9 + $0x58] sm:$0xff]
    %v652 = vld [vmem:[#allocation9 + $0x60] sm:$0xff]
    %v653 = vld [vmem:[#allocation9 + $0x68] sm:$0xff]
    %v654 = vld [vmem:[#allocation9 + $0x70] sm:$0xff]
    %v655 = vld [vmem:[#allocation9 + $0x78] sm:$0xff]
    %v656 = vld [vmem:[#allocation9 + $0x80] sm:$0xff]
    %v657 = vld [vmem:[#allocation9 + $0x88] sm:$0xff]
    %v658 = vld [vmem:[#allocation9 + $0x90] sm:$0xff]
    %v659 = vld [vmem:[#allocation9 + $0x98] sm:$0xff]
    %v660 = vld [vmem:[#allocation9 + $0xa0] sm:$0xff]
    %v661 = vld [vmem:[#allocation9 + $0xa8] sm:$0xff]
    %v662 = vld [vmem:[#allocation9 + $0xb0] sm:$0xff]
    %v663 = vld [vmem:[#allocation9 + $0xb8] sm:$0xff]
    %v664 = vld [vmem:[#allocation9 + $0xc0] sm:$0xff]
    %v665 = vld [vmem:[#allocation9 + $0xc8] sm:$0xff]
    %v666 = vld [vmem:[#allocation9 + $0xd0] sm:$0xff]
    %v667 = vld [vmem:[#allocation9 + $0xd8] sm:$0xff]
    %v668 = vld [vmem:[#allocation9 + $0xe0] sm:$0xff]
    %v669 = vld [vmem:[#allocation9 + $0xe8] sm:$0xff]
    %v670 = vld [vmem:[#allocation9 + $0xf0] sm:$0xff]
    %v671 = vld [vmem:[#allocation9 + $0xf8] sm:$0xff]
    %v672 = vld [vmem:[#allocation9 + $0x100] sm:$0xff]
    %v673 = vld [vmem:[#allocation9 + $0x108] sm:$0xff]
    %v674 = vld [vmem:[#allocation9 + $0x110] sm:$0xff]
    %v675 = vld [vmem:[#allocation9 + $0x118] sm:$0xff]
    %v676 = vld [vmem:[#allocation9 + $0x120] sm:$0xff]
    %v677 = vld [vmem:[#allocation9 + $0x128] sm:$0xff]
    %v678 = vld [vmem:[#allocation9 + $0x130] sm:$0xff]
    %v679 = vld [vmem:[#allocation9 + $0x138] sm:$0xff]
    %v680 = vld [vmem:[#allocation9 + $0x140] sm:$0xff]
    %v681 = vld [vmem:[#allocation9 + $0x148] sm:$0xff]
    %v682 = vld [vmem:[#allocation9 + $0x150] sm:$0xff]
    %v683 = vld [vmem:[#allocation9 + $0x158] sm:$0xff]
    %v684 = vld [vmem:[#allocation9 + $0x160] sm:$0xff]
    %v685 = vld [vmem:[#allocation9 + $0x168] sm:$0xff]
    %v686 = vld [vmem:[#allocation9 + $0x170] sm:$0xff]
    %v687 = vld [vmem:[#allocation9 + $0x178] sm:$0xff]
    %v688 = vld [vmem:[#allocation9 + $0x180] sm:$0xff]
    %v689 = vld [vmem:[#allocation9 + $0x188] sm:$0xff]
    %v690 = vld [vmem:[#allocation9 + $0x190] sm:$0xff]
    %v691 = vld [vmem:[#allocation9 + $0x198] sm:$0xff]
    %v692 = vld [vmem:[#allocation9 + $0x1a0] sm:$0xff]
    %v693 = vld [vmem:[#allocation9 + $0x1a8] sm:$0xff]
    %v694 = vld [vmem:[#allocation9 + $0x1b0] sm:$0xff]
    %v695 = vld [vmem:[#allocation9 + $0x1b8] sm:$0xff]
    %v696 = vld [vmem:[#allocation9 + $0x1c0] sm:$0xff]
    %v697 = vld [vmem:[#allocation9 + $0x1c8] sm:$0xff]
    %v698 = vld [vmem:[#allocation9 + $0x1d0] sm:$0xff]
    %v699 = vld [vmem:[#allocation9 + $0x1d8] sm:$0xff]
    %v700 = vld [vmem:[#allocation9 + $0x1e0] sm:$0xff]
    %v701 = vld [vmem:[#allocation9 + $0x1e8] sm:$0xff]
    %v702 = vld [vmem:[#allocation9 + $0x1f0] sm:$0xff]
    %v703 = vld [vmem:[#allocation9 + $0x1f8] sm:$0xff]
    %v704 = vld [vmem:[#allocation5] sm:$0xff]
    %v705 = vld [vmem:[#allocation5 + $0x10] sm:$0xff]
    %v706 = vld [vmem:[#allocation5 + $0x20] sm:$0xff]
    %v707 = vld [vmem:[#allocation5 + $0x30] sm:$0xff]
    %v708 = vld [vmem:[#allocation5 + $0x40] sm:$0xff]
    %v709 = vld [vmem:[#allocation5 + $0x50] sm:$0xff]
    %v710 = vld [vmem:[#allocation5 + $0x60] sm:$0xff]
    %v711 = vld [vmem:[#allocation5 + $0x70] sm:$0xff]
    %v712 = vld [vmem:[#allocation5 + $0x80] sm:$0xff]
    %v713 = vld [vmem:[#allocation5 + $0x90] sm:$0xff]
    %v714 = vld [vmem:[#allocation5 + $0xa0] sm:$0xff]
    %v715 = vld [vmem:[#allocation5 + $0xb0] sm:$0xff]
    %v716 = vld [vmem:[#allocation5 + $0xc0] sm:$0xff]
    %v717 = vld [vmem:[#allocation5 + $0xd0] sm:$0xff]
    %v718 = vld [vmem:[#allocation5 + $0xe0] sm:$0xff]
    %v719 = vld [vmem:[#allocation5 + $0xf0] sm:$0xff]
    %v720 = vld [vmem:[#allocation5 + $0x100] sm:$0xff]
    %v721 = vld [vmem:[#allocation5 + $0x110] sm:$0xff]
    %v722 = vld [vmem:[#allocation5 + $0x120] sm:$0xff]
    %v723 = vld [vmem:[#allocation5 + $0x130] sm:$0xff]
    %v724 = vld [vmem:[#allocation5 + $0x140] sm:$0xff]
    %v725 = vld [vmem:[#allocation5 + $0x150] sm:$0xff]
    %v726 = vld [vmem:[#allocation5 + $0x160] sm:$0xff]
    %v727 = vld [vmem:[#allocation5 + $0x170] sm:$0xff]
    %v728 = vld [vmem:[#allocation5 + $0x180] sm:$0xff]
    %v729 = vld [vmem:[#allocation5 + $0x190] sm:$0xff]
    %v730 = vld [vmem:[#allocation5 + $0x1a0] sm:$0xff]
    %v731 = vld [vmem:[#allocation5 + $0x1b0] sm:$0xff]
    %v732 = vld [vmem:[#allocation5 + $0x1c0] sm:$0xff]
    %v733 = vld [vmem:[#allocation5 + $0x1d0] sm:$0xff]
    %v734 = vld [vmem:[#allocation5 + $0x1e0] sm:$0xff]
    %v735 = vld [vmem:[#allocation5 + $0x1f0] sm:$0xff]
    %v736 = vld [vmem:[#allocation5 + $0x200] sm:$0xff]
    %v737 = vld [vmem:[#allocation5 + $0x210] sm:$0xff]
    %v738 = vld [vmem:[#allocation5 + $0x220] sm:$0xff]
    %v739 = vld [vmem:[#allocation5 + $0x230] sm:$0xff]
    %v740 = vld [vmem:[#allocation5 + $0x240] sm:$0xff]
    %v741 = vld [vmem:[#allocation5 + $0x250] sm:$0xff]
    %v742 = vld [vmem:[#allocation5 + $0x260] sm:$0xff]
    %v743 = vld [vmem:[#allocation5 + $0x270] sm:$0xff]
    %v744 = vld [vmem:[#allocation5 + $0x280] sm:$0xff]
    %v745 = vld [vmem:[#allocation5 + $0x290] sm:$0xff]
    %v746 = vld [vmem:[#allocation5 + $0x2a0] sm:$0xff]
    %v747 = vld [vmem:[#allocation5 + $0x2b0] sm:$0xff]
    %v748 = vld [vmem:[#allocation5 + $0x2c0] sm:$0xff]
    %v749 = vld [vmem:[#allocation5 + $0x2d0] sm:$0xff]
    %v750 = vld [vmem:[#allocation5 + $0x2e0] sm:$0xff]
    %v751 = vld [vmem:[#allocation5 + $0x2f0] sm:$0xff]
    %v752 = vld [vmem:[#allocation5 + $0x300] sm:$0xff]
    %v753 = vld [vmem:[#allocation5 + $0x310] sm:$0xff]
    %v754 = vld [vmem:[#allocation5 + $0x320] sm:$0xff]
    %v755 = vld [vmem:[#allocation5 + $0x330] sm:$0xff]
    %v756 = vld [vmem:[#allocation5 + $0x340] sm:$0xff]
    %v757 = vld [vmem:[#allocation5 + $0x350] sm:$0xff]
    %v758 = vld [vmem:[#allocation5 + $0x360] sm:$0xff]
    %v759 = vld [vmem:[#allocation5 + $0x370] sm:$0xff]
    %v760 = vld [vmem:[#allocation5 + $0x380] sm:$0xff]
    %v761 = vld [vmem:[#allocation5 + $0x390] sm:$0xff]
    %v762 = vld [vmem:[#allocation5 + $0x3a0] sm:$0xff]
    %v763 = vld [vmem:[#allocation5 + $0x3b0] sm:$0xff]
    %v764 = vld [vmem:[#allocation5 + $0x3c0] sm:$0xff]
    %v765 = vld [vmem:[#allocation5 + $0x3d0] sm:$0xff]
    %v766 = vld [vmem:[#allocation5 + $0x3e0] sm:$0xff]
    %v767 = vld [vmem:[#allocation5 + $0x3f0] sm:$0xff]
    %v768 = vld [vmem:[#allocation5 + $0x8] sm:$0xff]
    %v769 = vld [vmem:[#allocation5 + $0x18] sm:$0xff]
    %v770 = vld [vmem:[#allocation5 + $0x28] sm:$0xff]
    %v771 = vld [vmem:[#allocation5 + $0x38] sm:$0xff]
    %v772 = vld [vmem:[#allocation5 + $0x48] sm:$0xff]
    %v773 = vld [vmem:[#allocation5 + $0x58] sm:$0xff]
    %v774 = vld [vmem:[#allocation5 + $0x68] sm:$0xff]
    %v775 = vld [vmem:[#allocation5 + $0x78] sm:$0xff]
    %v776 = vld [vmem:[#allocation5 + $0x88] sm:$0xff]
    %v777 = vld [vmem:[#allocation5 + $0x98] sm:$0xff]
    %v778 = vld [vmem:[#allocation5 + $0xa8] sm:$0xff]
    %v779 = vld [vmem:[#allocation5 + $0xb8] sm:$0xff]
    %v780 = vld [vmem:[#allocation5 + $0xc8] sm:$0xff]
    %v781 = vld [vmem:[#allocation5 + $0xd8] sm:$0xff]
    %v782 = vld [vmem:[#allocation5 + $0xe8] sm:$0xff]
    %v783 = vld [vmem:[#allocation5 + $0xf8] sm:$0xff]
    %v784 = vld [vmem:[#allocation5 + $0x108] sm:$0xff]
    %v785 = vld [vmem:[#allocation5 + $0x118] sm:$0xff]
    %v786 = vld [vmem:[#allocation5 + $0x128] sm:$0xff]
    %v787 = vld [vmem:[#allocation5 + $0x138] sm:$0xff]
    %v788 = vld [vmem:[#allocation5 + $0x148] sm:$0xff]
    %v789 = vld [vmem:[#allocation5 + $0x158] sm:$0xff]
    %v790 = vld [vmem:[#allocation5 + $0x168] sm:$0xff]
    %v791 = vld [vmem:[#allocation5 + $0x178] sm:$0xff]
    %v792 = vld [vmem:[#allocation5 + $0x188] sm:$0xff]
    %v793 = vld [vmem:[#allocation5 + $0x198] sm:$0xff]
    %v794 = vld [vmem:[#allocation5 + $0x1a8] sm:$0xff]
    %v795 = vld [vmem:[#allocation5 + $0x1b8] sm:$0xff]
    %v796 = vld [vmem:[#allocation5 + $0x1c8] sm:$0xff]
    %v797 = vld [vmem:[#allocation5 + $0x1d8] sm:$0xff]
    %v798 = vld [vmem:[#allocation5 + $0x1e8] sm:$0xff]
    %v799 = vld [vmem:[#allocation5 + $0x1f8] sm:$0xff]
    %v800 = vld [vmem:[#allocation5 + $0x208] sm:$0xff]
    %v801 = vld [vmem:[#allocation5 + $0x218] sm:$0xff]
    %v802 = vld [vmem:[#allocation5 + $0x228] sm:$0xff]
    %v803 = vld [vmem:[#allocation5 + $0x238] sm:$0xff]
    %v804 = vld [vmem:[#allocation5 + $0x248] sm:$0xff]
    %v805 = vld [vmem:[#allocation5 + $0x258] sm:$0xff]
    %v806 = vld [vmem:[#allocation5 + $0x268] sm:$0xff]
    %v807 = vld [vmem:[#allocation5 + $0x278] sm:$0xff]
    %v808 = vld [vmem:[#allocation5 + $0x288] sm:$0xff]
    %v809 = vld [vmem:[#allocation5 + $0x298] sm:$0xff]
    %v810 = vld [vmem:[#allocation5 + $0x2a8] sm:$0xff]
    %v811 = vld [vmem:[#allocation5 + $0x2b8] sm:$0xff]
    %v812 = vld [vmem:[#allocation5 + $0x2c8] sm:$0xff]
    %v813 = vld [vmem:[#allocation5 + $0x2d8] sm:$0xff]
    %v814 = vld [vmem:[#allocation5 + $0x2e8] sm:$0xff]
    %v815 = vld [vmem:[#allocation5 + $0x2f8] sm:$0xff]
    %v816 = vld [vmem:[#allocation5 + $0x308] sm:$0xff]
    %v817 = vld [vmem:[#allocation5 + $0x318] sm:$0xff]
    %v818 = vld [vmem:[#allocation5 + $0x328] sm:$0xff]
    %v819 = vld [vmem:[#allocation5 + $0x338] sm:$0xff]
    %v820 = vld [vmem:[#allocation5 + $0x348] sm:$0xff]
    %v821 = vld [vmem:[#allocation5 + $0x358] sm:$0xff]
    %v822 = vld [vmem:[#allocation5 + $0x368] sm:$0xff]
    %v823 = vld [vmem:[#allocation5 + $0x378] sm:$0xff]
    %v824 = vld [vmem:[#allocation5 + $0x388] sm:$0xff]
    %v825 = vld [vmem:[#allocation5 + $0x398] sm:$0xff]
    %v826 = vld [vmem:[#allocation5 + $0x3a8] sm:$0xff]
    %v827 = vld [vmem:[#allocation5 + $0x3b8] sm:$0xff]
    %v828 = vld [vmem:[#allocation5 + $0x3c8] sm:$0xff]
    %v829 = vld [vmem:[#allocation5 + $0x3d8] sm:$0xff]
    %v830 = vld [vmem:[#allocation5 + $0x3e8] sm:$0xff]
    %v831 = vld [vmem:[#allocation5 + $0x3f8] sm:$0xff]
    %v832 = vadd.f32 %v704, %v768
    %v833 = vadd.f32 %v705, %v769
    %v834 = vadd.f32 %v706, %v770
    %v835 = vadd.f32 %v707, %v771
    %v836 = vadd.f32 %v708, %v772
    %v837 = vadd.f32 %v709, %v773
    %v838 = vadd.f32 %v710, %v774
    %v839 = vadd.f32 %v711, %v775
    %v840 = vadd.f32 %v712, %v776
    %v841 = vadd.f32 %v713, %v777
    %v842 = vadd.f32 %v714, %v778
    %v843 = vadd.f32 %v715, %v779
    %v844 = vadd.f32 %v716, %v780
    %v845 = vadd.f32 %v717, %v781
    %v846 = vadd.f32 %v718, %v782
    %v847 = vadd.f32 %v719, %v783
    %v848 = vadd.f32 %v720, %v784
    %v849 = vadd.f32 %v721, %v785
    %v850 = vadd.f32 %v722, %v786
    %v851 = vadd.f32 %v723, %v787
    %v852 = vadd.f32 %v724, %v788
    %v853 = vadd.f32 %v725, %v789
    %v854 = vadd.f32 %v726, %v790
    %v855 = vadd.f32 %v727, %v791
    %v856 = vadd.f32 %v728, %v792
    %v857 = vadd.f32 %v729, %v793
    %v858 = vadd.f32 %v730, %v794
    %v859 = vadd.f32 %v731, %v795
    %v860 = vadd.f32 %v732, %v796
    %v861 = vadd.f32 %v733, %v797
    %v862 = vadd.f32 %v734, %v798
    %v863 = vadd.f32 %v735, %v799
    %v864 = vadd.f32 %v736, %v800
    %v865 = vadd.f32 %v737, %v801
    %v866 = vadd.f32 %v738, %v802
    %v867 = vadd.f32 %v739, %v803
    %v868 = vadd.f32 %v740, %v804
    %v869 = vadd.f32 %v741, %v805
    %v870 = vadd.f32 %v742, %v806
    %v871 = vadd.f32 %v743, %v807
    %v872 = vadd.f32 %v744, %v808
    %v873 = vadd.f32 %v745, %v809
    %v874 = vadd.f32 %v746, %v810
    %v875 = vadd.f32 %v747, %v811
    %v876 = vadd.f32 %v748, %v812
    %v877 = vadd.f32 %v749, %v813
    %v878 = vadd.f32 %v750, %v814
    %v879 = vadd.f32 %v751, %v815
    %v880 = vadd.f32 %v752, %v816
    %v881 = vadd.f32 %v753, %v817
    %v882 = vadd.f32 %v754, %v818
    %v883 = vadd.f32 %v755, %v819
    %v884 = vadd.f32 %v756, %v820
    %v885 = vadd.f32 %v757, %v821
    %v886 = vadd.f32 %v758, %v822
    %v887 = vadd.f32 %v759, %v823
    %v888 = vadd.f32 %v760, %v824
    %v889 = vadd.f32 %v761, %v825
    %v890 = vadd.f32 %v762, %v826
    %v891 = vadd.f32 %v763, %v827
    %v892 = vadd.f32 %v764, %v828
    %v893 = vadd.f32 %v765, %v829
    %v894 = vadd.f32 %v766, %v830
    %v895 = vadd.f32 %v767, %v831
    %v896 = vadd.f32 %v640, %v832
    %v897 = vadd.f32 %v641, %v833
    %v898 = vadd.f32 %v642, %v834
    %v899 = vadd.f32 %v643, %v835
    %v900 = vadd.f32 %v644, %v836
    %v901 = vadd.f32 %v645, %v837
    %v902 = vadd.f32 %v646, %v838
    %v903 = vadd.f32 %v647, %v839
    %v904 = vadd.f32 %v648, %v840
    %v905 = vadd.f32 %v649, %v841
    %v906 = vadd.f32 %v650, %v842
    %v907 = vadd.f32 %v651, %v843
    %v908 = vadd.f32 %v652, %v844
    %v909 = vadd.f32 %v653, %v845
    %v910 = vadd.f32 %v654, %v846
    %v911 = vadd.f32 %v655, %v847
    %v912 = vadd.f32 %v656, %v848
    %v913 = vadd.f32 %v657, %v849
    %v914 = vadd.f32 %v658, %v850
    %v915 = vadd.f32 %v659, %v851
    %v916 = vadd.f32 %v660, %v852
    %v917 = vadd.f32 %v661, %v853
    %v918 = vadd.f32 %v662, %v854
    %v919 = vadd.f32 %v663, %v855
    %v920 = vadd.f32 %v664, %v856
    %v921 = vadd.f32 %v665, %v857
    %v922 = vadd.f32 %v666, %v858
    %v923 = vadd.f32 %v667, %v859
    %v924 = vadd.f32 %v668, %v860
    %v925 = vadd.f32 %v669, %v861
    %v926 = vadd.f32 %v670, %v862
    %v927 = vadd.f32 %v671, %v863
    %v928 = vadd.f32 %v672, %v864
    %v929 = vadd.f32 %v673, %v865
    %v930 = vadd.f32 %v674, %v866
    %v931 = vadd.f32 %v675, %v867
    %v932 = vadd.f32 %v676, %v868
    %v933 = vadd.f32 %v677, %v869
    %v934 = vadd.f32 %v678, %v870
    %v935 = vadd.f32 %v679, %v871
    %v936 = vadd.f32 %v680, %v872
    %v937 = vadd.f32 %v681, %v873
    %v938 = vadd.f32 %v682, %v874
    %v939 = vadd.f32 %v683, %v875
    %v940 = vadd.f32 %v684, %v876
    %v941 = vadd.f32 %v685, %v877
    %v942 = vadd.f32 %v686, %v878
    %v943 = vadd.f32 %v687, %v879
    %v944 = vadd.f32 %v688, %v880
    %v945 = vadd.f32 %v689, %v881
    %v946 = vadd.f32 %v690, %v882
    %v947 = vadd.f32 %v691, %v883
    %v948 = vadd.f32 %v692, %v884
    %v949 = vadd.f32 %v693, %v885
    %v950 = vadd.f32 %v694, %v886
    %v951 = vadd.f32 %v695, %v887
    %v952 = vadd.f32 %v696, %v888
    %v953 = vadd.f32 %v697, %v889
    %v954 = vadd.f32 %v698, %v890
    %v955 = vadd.f32 %v699, %v891
    %v956 = vadd.f32 %v700, %v892
    %v957 = vadd.f32 %v701, %v893
    %v958 = vadd.f32 %v702, %v894
    %v959 = vadd.f32 %v703, %v895
    %960 = vst [vmem:[#allocation9] sm:$0xff] %v896
    %961 = vst [vmem:[#allocation9 + $0x8] sm:$0xff] %v897
    %962 = vst [vmem:[#allocation9 + $0x10] sm:$0xff] %v898
    %963 = vst [vmem:[#allocation9 + $0x18] sm:$0xff] %v899
    %964 = vst [vmem:[#allocation9 + $0x20] sm:$0xff] %v900
    %965 = vst [vmem:[#allocation9 + $0x28] sm:$0xff] %v901
    %966 = vst [vmem:[#allocation9 + $0x30] sm:$0xff] %v902
    %967 = vst [vmem:[#allocation9 + $0x38] sm:$0xff] %v903
    %968 = vst [vmem:[#allocation9 + $0x40] sm:$0xff] %v904
    %969 = vst [vmem:[#allocation9 + $0x48] sm:$0xff] %v905
    %970 = vst [vmem:[#allocation9 + $0x50] sm:$0xff] %v906
    %971 = vst [vmem:[#allocation9 + $0x58] sm:$0xff] %v907
    %972 = vst [vmem:[#allocation9 + $0x60] sm:$0xff] %v908
    %973 = vst [vmem:[#allocation9 + $0x68] sm:$0xff] %v909
    %974 = vst [vmem:[#allocation9 + $0x70] sm:$0xff] %v910
    %975 = vst [vmem:[#allocation9 + $0x78] sm:$0xff] %v911
    %976 = vst [vmem:[#allocation9 + $0x80] sm:$0xff] %v912
    %977 = vst [vmem:[#allocation9 + $0x88] sm:$0xff] %v913
    %978 = vst [vmem:[#allocation9 + $0x90] sm:$0xff] %v914
    %979 = vst [vmem:[#allocation9 + $0x98] sm:$0xff] %v915
    %980 = vst [vmem:[#allocation9 + $0xa0] sm:$0xff] %v916
    %981 = vst [vmem:[#allocation9 + $0xa8] sm:$0xff] %v917
    %982 = vst [vmem:[#allocation9 + $0xb0] sm:$0xff] %v918
    %983 = vst [vmem:[#allocation9 + $0xb8] sm:$0xff] %v919
    %984 = vst [vmem:[#allocation9 + $0xc0] sm:$0xff] %v920
    %985 = vst [vmem:[#allocation9 + $0xc8] sm:$0xff] %v921
    %986 = vst [vmem:[#allocation9 + $0xd0] sm:$0xff] %v922
    %987 = vst [vmem:[#allocation9 + $0xd8] sm:$0xff] %v923
    %988 = vst [vmem:[#allocation9 + $0xe0] sm:$0xff] %v924
    %989 = vst [vmem:[#allocation9 + $0xe8] sm:$0xff] %v925
    %990 = vst [vmem:[#allocation9 + $0xf0] sm:$0xff] %v926
    %991 = vst [vmem:[#allocation9 + $0xf8] sm:$0xff] %v927
    %992 = vst [vmem:[#allocation9 + $0x100] sm:$0xff] %v928
    %993 = vst [vmem:[#allocation9 + $0x108] sm:$0xff] %v929
    %994 = vst [vmem:[#allocation9 + $0x110] sm:$0xff] %v930
    %995 = vst [vmem:[#allocation9 + $0x118] sm:$0xff] %v931
    %996 = vst [vmem:[#allocation9 + $0x120] sm:$0xff] %v932
    %997 = vst [vmem:[#allocation9 + $0x128] sm:$0xff] %v933
    %998 = vst [vmem:[#allocation9 + $0x130] sm:$0xff] %v934
    %999 = vst [vmem:[#allocation9 + $0x138] sm:$0xff] %v935
    %1000 = vst [vmem:[#allocation9 + $0x140] sm:$0xff] %v936
    %1001 = vst [vmem:[#allocation9 + $0x148] sm:$0xff] %v937
    %1002 = vst [vmem:[#allocation9 + $0x150] sm:$0xff] %v938
    %1003 = vst [vmem:[#allocation9 + $0x158] sm:$0xff] %v939
    %1004 = vst [vmem:[#allocation9 + $0x160] sm:$0xff] %v940
    %1005 = vst [vmem:[#allocation9 + $0x168] sm:$0xff] %v941
    %1006 = vst [vmem:[#allocation9 + $0x170] sm:$0xff] %v942
    %1007 = vst [vmem:[#allocation9 + $0x178] sm:$0xff] %v943
    %1008 = vst [vmem:[#allocation9 + $0x180] sm:$0xff] %v944
    %1009 = vst [vmem:[#allocation9 + $0x188] sm:$0xff] %v945
    %1010 = vst [vmem:[#allocation9 + $0x190] sm:$0xff] %v946
    %1011 = vst [vmem:[#allocation9 + $0x198] sm:$0xff] %v947
    %1012 = vst [vmem:[#allocation9 + $0x1a0] sm:$0xff] %v948
    %1013 = vst [vmem:[#allocation9 + $0x1a8] sm:$0xff] %v949
    %1014 = vst [vmem:[#allocation9 + $0x1b0] sm:$0xff] %v950
    %1015 = vst [vmem:[#allocation9 + $0x1b8] sm:$0xff] %v951
    %1016 = vst [vmem:[#allocation9 + $0x1c0] sm:$0xff] %v952
    %1017 = vst [vmem:[#allocation9 + $0x1c8] sm:$0xff] %v953
    %1018 = vst [vmem:[#allocation9 + $0x1d0] sm:$0xff] %v954
    %1019 = vst [vmem:[#allocation9 + $0x1d8] sm:$0xff] %v955
    %1020 = vst [vmem:[#allocation9 + $0x1e0] sm:$0xff] %v956
    %1021 = vst [vmem:[#allocation9 + $0x1e8] sm:$0xff] %v957
    %1022 = vst [vmem:[#allocation9 + $0x1f0] sm:$0xff] %v958
    %1023 = vst [vmem:[#allocation9 + $0x1f8] sm:$0xff] %v959
    %v1024 = vld [vmem:[#allocation11] sm:$0xff]
    %v1025 = vld [vmem:[#allocation11 + $0x8] sm:$0xff]
    %v1026 = vld [vmem:[#allocation11 + $0x10] sm:$0xff]
    %v1027 = vld [vmem:[#allocation11 + $0x18] sm:$0xff]
    %v1028 = vld [vmem:[#allocation11 + $0x20] sm:$0xff]
    %v1029 = vld [vmem:[#allocation11 + $0x28] sm:$0xff]
    %v1030 = vld [vmem:[#allocation11 + $0x30] sm:$0xff]
    %v1031 = vld [vmem:[#allocation11 + $0x38] sm:$0xff]
    %v1032 = vld [vmem:[#allocation11 + $0x40] sm:$0xff]
    %v1033 = vld [vmem:[#allocation11 + $0x48] sm:$0xff]
    %v1034 = vld [vmem:[#allocation11 + $0x50] sm:$0xff]
    %v1035 = vld [vmem:[#allocation11 + $0x58] sm:$0xff]
    %v1036 = vld [vmem:[#allocation11 + $0x60] sm:$0xff]
    %v1037 = vld [vmem:[#allocation11 + $0x68] sm:$0xff]
    %v1038 = vld [vmem:[#allocation11 + $0x70] sm:$0xff]
    %v1039 = vld [vmem:[#allocation11 + $0x78] sm:$0xff]
    %v1040 = vld [vmem:[#allocation11 + $0x80] sm:$0xff]
    %v1041 = vld [vmem:[#allocation11 + $0x88] sm:$0xff]
    %v1042 = vld [vmem:[#allocation11 + $0x90] sm:$0xff]
    %v1043 = vld [vmem:[#allocation11 + $0x98] sm:$0xff]
    %v1044 = vld [vmem:[#allocation11 + $0xa0] sm:$0xff]
    %v1045 = vld [vmem:[#allocation11 + $0xa8] sm:$0xff]
    %v1046 = vld [vmem:[#allocation11 + $0xb0] sm:$0xff]
    %v1047 = vld [vmem:[#allocation11 + $0xb8] sm:$0xff]
    %v1048 = vld [vmem:[#allocation11 + $0xc0] sm:$0xff]
    %v1049 = vld [vmem:[#allocation11 + $0xc8] sm:$0xff]
    %v1050 = vld [vmem:[#allocation11 + $0xd0] sm:$0xff]
    %v1051 = vld [vmem:[#allocation11 + $0xd8] sm:$0xff]
    %v1052 = vld [vmem:[#allocation11 + $0xe0] sm:$0xff]
    %v1053 = vld [vmem:[#allocation11 + $0xe8] sm:$0xff]
    %v1054 = vld [vmem:[#allocation11 + $0xf0] sm:$0xff]
    %v1055 = vld [vmem:[#allocation11 + $0xf8] sm:$0xff]
    %v1056 = vld [vmem:[#allocation11 + $0x100] sm:$0xff]
    %v1057 = vld [vmem:[#allocation11 + $0x108] sm:$0xff]
    %v1058 = vld [vmem:[#allocation11 + $0x110] sm:$0xff]
    %v1059 = vld [vmem:[#allocation11 + $0x118] sm:$0xff]
    %v1060 = vld [vmem:[#allocation11 + $0x120] sm:$0xff]
    %v1061 = vld [vmem:[#allocation11 + $0x128] sm:$0xff]
    %v1062 = vld [vmem:[#allocation11 + $0x130] sm:$0xff]
    %v1063 = vld [vmem:[#allocation11 + $0x138] sm:$0xff]
    %v1064 = vld [vmem:[#allocation11 + $0x140] sm:$0xff]
    %v1065 = vld [vmem:[#allocation11 + $0x148] sm:$0xff]
    %v1066 = vld [vmem:[#allocation11 + $0x150] sm:$0xff]
    %v1067 = vld [vmem:[#allocation11 + $0x158] sm:$0xff]
    %v1068 = vld [vmem:[#allocation11 + $0x160] sm:$0xff]
    %v1069 = vld [vmem:[#allocation11 + $0x168] sm:$0xff]
    %v1070 = vld [vmem:[#allocation11 + $0x170] sm:$0xff]
    %v1071 = vld [vmem:[#allocation11 + $0x178] sm:$0xff]
    %v1072 = vld [vmem:[#allocation11 + $0x180] sm:$0xff]
    %v1073 = vld [vmem:[#allocation11 + $0x188] sm:$0xff]
    %v1074 = vld [vmem:[#allocation11 + $0x190] sm:$0xff]
    %v1075 = vld [vmem:[#allocation11 + $0x198] sm:$0xff]
    %v1076 = vld [vmem:[#allocation11 + $0x1a0] sm:$0xff]
    %v1077 = vld [vmem:[#allocation11 + $0x1a8] sm:$0xff]
    %v1078 = vld [vmem:[#allocation11 + $0x1b0] sm:$0xff]
    %v1079 = vld [vmem:[#allocation11 + $0x1b8] sm:$0xff]
    %v1080 = vld [vmem:[#allocation11 + $0x1c0] sm:$0xff]
    %v1081 = vld [vmem:[#allocation11 + $0x1c8] sm:$0xff]
    %v1082 = vld [vmem:[#allocation11 + $0x1d0] sm:$0xff]
    %v1083 = vld [vmem:[#allocation11 + $0x1d8] sm:$0xff]
    %v1084 = vld [vmem:[#allocation11 + $0x1e0] sm:$0xff]
    %v1085 = vld [vmem:[#allocation11 + $0x1e8] sm:$0xff]
    %v1086 = vld [vmem:[#allocation11 + $0x1f0] sm:$0xff]
    %v1087 = vld [vmem:[#allocation11 + $0x1f8] sm:$0xff]
    %v1088 = vld [vmem:[#allocation7] sm:$0xff]
    %v1089 = vld [vmem:[#allocation7 + $0x10] sm:$0xff]
    %v1090 = vld [vmem:[#allocation7 + $0x20] sm:$0xff]
    %v1091 = vld [vmem:[#allocation7 + $0x30] sm:$0xff]
    %v1092 = vld [vmem:[#allocation7 + $0x40] sm:$0xff]
    %v1093 = vld [vmem:[#allocation7 + $0x50] sm:$0xff]
    %v1094 = vld [vmem:[#allocation7 + $0x60] sm:$0xff]
    %v1095 = vld [vmem:[#allocation7 + $0x70] sm:$0xff]
    %v1096 = vld [vmem:[#allocation7 + $0x80] sm:$0xff]
    %v1097 = vld [vmem:[#allocation7 + $0x90] sm:$0xff]
    %v1098 = vld [vmem:[#allocation7 + $0xa0] sm:$0xff]
    %v1099 = vld [vmem:[#allocation7 + $0xb0] sm:$0xff]
    %v1100 = vld [vmem:[#allocation7 + $0xc0] sm:$0xff]
    %v1101 = vld [vmem:[#allocation7 + $0xd0] sm:$0xff]
    %v1102 = vld [vmem:[#allocation7 + $0xe0] sm:$0xff]
    %v1103 = vld [vmem:[#allocation7 + $0xf0] sm:$0xff]
    %v1104 = vld [vmem:[#allocation7 + $0x100] sm:$0xff]
    %v1105 = vld [vmem:[#allocation7 + $0x110] sm:$0xff]
    %v1106 = vld [vmem:[#allocation7 + $0x120] sm:$0xff]
    %v1107 = vld [vmem:[#allocation7 + $0x130] sm:$0xff]
    %v1108 = vld [vmem:[#allocation7 + $0x140] sm:$0xff]
    %v1109 = vld [vmem:[#allocation7 + $0x150] sm:$0xff]
    %v1110 = vld [vmem:[#allocation7 + $0x160] sm:$0xff]
    %v1111 = vld [vmem:[#allocation7 + $0x170] sm:$0xff]
    %v1112 = vld [vmem:[#allocation7 + $0x180] sm:$0xff]
    %v1113 = vld [vmem:[#allocation7 + $0x190] sm:$0xff]
    %v1114 = vld [vmem:[#allocation7 + $0x1a0] sm:$0xff]
    %v1115 = vld [vmem:[#allocation7 + $0x1b0] sm:$0xff]
    %v1116 = vld [vmem:[#allocation7 + $0x1c0] sm:$0xff]
    %v1117 = vld [vmem:[#allocation7 + $0x1d0] sm:$0xff]
    %v1118 = vld [vmem:[#allocation7 + $0x1e0] sm:$0xff]
    %v1119 = vld [vmem:[#allocation7 + $0x1f0] sm:$0xff]
    %v1120 = vld [vmem:[#allocation7 + $0x200] sm:$0xff]
    %v1121 = vld [vmem:[#allocation7 + $0x210] sm:$0xff]
    %v1122 = vld [vmem:[#allocation7 + $0x220] sm:$0xff]
    %v1123 = vld [vmem:[#allocation7 + $0x230] sm:$0xff]
    %v1124 = vld [vmem:[#allocation7 + $0x240] sm:$0xff]
    %v1125 = vld [vmem:[#allocation7 + $0x250] sm:$0xff]
    %v1126 = vld [vmem:[#allocation7 + $0x260] sm:$0xff]
    %v1127 = vld [vmem:[#allocation7 + $0x270] sm:$0xff]
    %v1128 = vld [vmem:[#allocation7 + $0x280] sm:$0xff]
    %v1129 = vld [vmem:[#allocation7 + $0x290] sm:$0xff]
    %v1130 = vld [vmem:[#allocation7 + $0x2a0] sm:$0xff]
    %v1131 = vld [vmem:[#allocation7 + $0x2b0] sm:$0xff]
    %v1132 = vld [vmem:[#allocation7 + $0x2c0] sm:$0xff]
    %v1133 = vld [vmem:[#allocation7 + $0x2d0] sm:$0xff]
    %v1134 = vld [vmem:[#allocation7 + $0x2e0] sm:$0xff]
    %v1135 = vld [vmem:[#allocation7 + $0x2f0] sm:$0xff]
    %v1136 = vld [vmem:[#allocation7 + $0x300] sm:$0xff]
    %v1137 = vld [vmem:[#allocation7 + $0x310] sm:$0xff]
    %v1138 = vld [vmem:[#allocation7 + $0x320] sm:$0xff]
    %v1139 = vld [vmem:[#allocation7 + $0x330] sm:$0xff]
    %v1140 = vld [vmem:[#allocation7 + $0x340] sm:$0xff]
    %v1141 = vld [vmem:[#allocation7 + $0x350] sm:$0xff]
    %v1142 = vld [vmem:[#allocation7 + $0x360] sm:$0xff]
    %v1143 = vld [vmem:[#allocation7 + $0x370] sm:$0xff]
    %v1144 = vld [vmem:[#allocation7 + $0x380] sm:$0xff]
    %v1145 = vld [vmem:[#allocation7 + $0x390] sm:$0xff]
    %v1146 = vld [vmem:[#allocation7 + $0x3a0] sm:$0xff]
    %v1147 = vld [vmem:[#allocation7 + $0x3b0] sm:$0xff]
    %v1148 = vld [vmem:[#allocation7 + $0x3c0] sm:$0xff]
    %v1149 = vld [vmem:[#allocation7 + $0x3d0] sm:$0xff]
    %v1150 = vld [vmem:[#allocation7 + $0x3e0] sm:$0xff]
    %v1151 = vld [vmem:[#allocation7 + $0x3f0] sm:$0xff]
    %v1152 = vld [vmem:[#allocation7 + $0x8] sm:$0xff]
    %v1153 = vld [vmem:[#allocation7 + $0x18] sm:$0xff]
    %v1154 = vld [vmem:[#allocation7 + $0x28] sm:$0xff]
    %v1155 = vld [vmem:[#allocation7 + $0x38] sm:$0xff]
    %v1156 = vld [vmem:[#allocation7 + $0x48] sm:$0xff]
    %v1157 = vld [vmem:[#allocation7 + $0x58] sm:$0xff]
    %v1158 = vld [vmem:[#allocation7 + $0x68] sm:$0xff]
    %v1159 = vld [vmem:[#allocation7 + $0x78] sm:$0xff]
    %v1160 = vld [vmem:[#allocation7 + $0x88] sm:$0xff]
    %v1161 = vld [vmem:[#allocation7 + $0x98] sm:$0xff]
    %v1162 = vld [vmem:[#allocation7 + $0xa8] sm:$0xff]
    %v1163 = vld [vmem:[#allocation7 + $0xb8] sm:$0xff]
    %v1164 = vld [vmem:[#allocation7 + $0xc8] sm:$0xff]
    %v1165 = vld [vmem:[#allocation7 + $0xd8] sm:$0xff]
    %v1166 = vld [vmem:[#allocation7 + $0xe8] sm:$0xff]
    %v1167 = vld [vmem:[#allocation7 + $0xf8] sm:$0xff]
    %v1168 = vld [vmem:[#allocation7 + $0x108] sm:$0xff]
    %v1169 = vld [vmem:[#allocation7 + $0x118] sm:$0xff]
    %v1170 = vld [vmem:[#allocation7 + $0x128] sm:$0xff]
    %v1171 = vld [vmem:[#allocation7 + $0x138] sm:$0xff]
    %v1172 = vld [vmem:[#allocation7 + $0x148] sm:$0xff]
    %v1173 = vld [vmem:[#allocation7 + $0x158] sm:$0xff]
    %v1174 = vld [vmem:[#allocation7 + $0x168] sm:$0xff]
    %v1175 = vld [vmem:[#allocation7 + $0x178] sm:$0xff]
    %v1176 = vld [vmem:[#allocation7 + $0x188] sm:$0xff]
    %v1177 = vld [vmem:[#allocation7 + $0x198] sm:$0xff]
    %v1178 = vld [vmem:[#allocation7 + $0x1a8] sm:$0xff]
    %v1179 = vld [vmem:[#allocation7 + $0x1b8] sm:$0xff]
    %v1180 = vld [vmem:[#allocation7 + $0x1c8] sm:$0xff]
    %v1181 = vld [vmem:[#allocation7 + $0x1d8] sm:$0xff]
    %v1182 = vld [vmem:[#allocation7 + $0x1e8] sm:$0xff]
    %v1183 = vld [vmem:[#allocation7 + $0x1f8] sm:$0xff]
    %v1184 = vld [vmem:[#allocation7 + $0x208] sm:$0xff]
    %v1185 = vld [vmem:[#allocation7 + $0x218] sm:$0xff]
    %v1186 = vld [vmem:[#allocation7 + $0x228] sm:$0xff]
    %v1187 = vld [vmem:[#allocation7 + $0x238] sm:$0xff]
    %v1188 = vld [vmem:[#allocation7 + $0x248] sm:$0xff]
    %v1189 = vld [vmem:[#allocation7 + $0x258] sm:$0xff]
    %v1190 = vld [vmem:[#allocation7 + $0x268] sm:$0xff]
    %v1191 = vld [vmem:[#allocation7 + $0x278] sm:$0xff]
    %v1192 = vld [vmem:[#allocation7 + $0x288] sm:$0xff]
    %v1193 = vld [vmem:[#allocation7 + $0x298] sm:$0xff]
    %v1194 = vld [vmem:[#allocation7 + $0x2a8] sm:$0xff]
    %v1195 = vld [vmem:[#allocation7 + $0x2b8] sm:$0xff]
    %v1196 = vld [vmem:[#allocation7 + $0x2c8] sm:$0xff]
    %v1197 = vld [vmem:[#allocation7 + $0x2d8] sm:$0xff]
    %v1198 = vld [vmem:[#allocation7 + $0x2e8] sm:$0xff]
    %v1199 = vld [vmem:[#allocation7 + $0x2f8] sm:$0xff]
    %v1200 = vld [vmem:[#allocation7 + $0x308] sm:$0xff]
    %v1201 = vld [vmem:[#allocation7 + $0x318] sm:$0xff]
    %v1202 = vld [vmem:[#allocation7 + $0x328] sm:$0xff]
    %v1203 = vld [vmem:[#allocation7 + $0x338] sm:$0xff]
    %v1204 = vld [vmem:[#allocation7 + $0x348] sm:$0xff]
    %v1205 = vld [vmem:[#allocation7 + $0x358] sm:$0xff]
    %v1206 = vld [vmem:[#allocation7 + $0x368] sm:$0xff]
    %v1207 = vld [vmem:[#allocation7 + $0x378] sm:$0xff]
    %v1208 = vld [vmem:[#allocation7 + $0x388] sm:$0xff]
    %v1209 = vld [vmem:[#allocation7 + $0x398] sm:$0xff]
    %v1210 = vld [vmem:[#allocation7 + $0x3a8] sm:$0xff]
    %v1211 = vld [vmem:[#allocation7 + $0x3b8] sm:$0xff]
    %v1212 = vld [vmem:[#allocation7 + $0x3c8] sm:$0xff]
    %v1213 = vld [vmem:[#allocation7 + $0x3d8] sm:$0xff]
    %v1214 = vld [vmem:[#allocation7 + $0x3e8] sm:$0xff]
    %v1215 = vld [vmem:[#allocation7 + $0x3f8] sm:$0xff]
    %v1216 = vadd.f32 %v1088, %v1152
    %v1217 = vadd.f32 %v1089, %v1153
    %v1218 = vadd.f32 %v1090, %v1154
    %v1219 = vadd.f32 %v1091, %v1155
    %v1220 = vadd.f32 %v1092, %v1156
    %v1221 = vadd.f32 %v1093, %v1157
    %v1222 = vadd.f32 %v1094, %v1158
    %v1223 = vadd.f32 %v1095, %v1159
    %v1224 = vadd.f32 %v1096, %v1160
    %v1225 = vadd.f32 %v1097, %v1161
    %v1226 = vadd.f32 %v1098, %v1162
    %v1227 = vadd.f32 %v1099, %v1163
    %v1228 = vadd.f32 %v1100, %v1164
    %v1229 = vadd.f32 %v1101, %v1165
    %v1230 = vadd.f32 %v1102, %v1166
    %v1231 = vadd.f32 %v1103, %v1167
    %v1232 = vadd.f32 %v1104, %v1168
    %v1233 = vadd.f32 %v1105, %v1169
    %v1234 = vadd.f32 %v1106, %v1170
    %v1235 = vadd.f32 %v1107, %v1171
    %v1236 = vadd.f32 %v1108, %v1172
    %v1237 = vadd.f32 %v1109, %v1173
    %v1238 = vadd.f32 %v1110, %v1174
    %v1239 = vadd.f32 %v1111, %v1175
    %v1240 = vadd.f32 %v1112, %v1176
    %v1241 = vadd.f32 %v1113, %v1177
    %v1242 = vadd.f32 %v1114, %v1178
    %v1243 = vadd.f32 %v1115, %v1179
    %v1244 = vadd.f32 %v1116, %v1180
    %v1245 = vadd.f32 %v1117, %v1181
    %v1246 = vadd.f32 %v1118, %v1182
    %v1247 = vadd.f32 %v1119, %v1183
    %v1248 = vadd.f32 %v1120, %v1184
    %v1249 = vadd.f32 %v1121, %v1185
    %v1250 = vadd.f32 %v1122, %v1186
    %v1251 = vadd.f32 %v1123, %v1187
    %v1252 = vadd.f32 %v1124, %v1188
    %v1253 = vadd.f32 %v1125, %v1189
    %v1254 = vadd.f32 %v1126, %v1190
    %v1255 = vadd.f32 %v1127, %v1191
    %v1256 = vadd.f32 %v1128, %v1192
    %v1257 = vadd.f32 %v1129, %v1193
    %v1258 = vadd.f32 %v1130, %v1194
    %v1259 = vadd.f32 %v1131, %v1195
    %v1260 = vadd.f32 %v1132, %v1196
    %v1261 = vadd.f32 %v1133, %v1197
    %v1262 = vadd.f32 %v1134, %v1198
    %v1263 = vadd.f32 %v1135, %v1199
    %v1264 = vadd.f32 %v1136, %v1200
    %v1265 = vadd.f32 %v1137, %v1201
    %v1266 = vadd.f32 %v1138, %v1202
    %v1267 = vadd.f32 %v1139, %v1203
    %v1268 = vadd.f32 %v1140, %v1204
    %v1269 = vadd.f32 %v1141, %v1205
    %v1270 = vadd.f32 %v1142, %v1206
    %v1271 = vadd.f32 %v1143, %v1207
    %v1272 = vadd.f32 %v1144, %v1208
    %v1273 = vadd.f32 %v1145, %v1209
    %v1274 = vadd.f32 %v1146, %v1210
    %v1275 = vadd.f32 %v1147, %v1211
    %v1276 = vadd.f32 %v1148, %v1212
    %v1277 = vadd.f32 %v1149, %v1213
    %v1278 = vadd.f32 %v1150, %v1214
    %v1279 = vadd.f32 %v1151, %v1215
    %v1280 = vadd.f32 %v1024, %v1216
    %v1281 = vadd.f32 %v1025, %v1217
    %v1282 = vadd.f32 %v1026, %v1218
    %v1283 = vadd.f32 %v1027, %v1219
    %v1284 = vadd.f32 %v1028, %v1220
    %v1285 = vadd.f32 %v1029, %v1221
    %v1286 = vadd.f32 %v1030, %v1222
    %v1287 = vadd.f32 %v1031, %v1223
    %v1288 = vadd.f32 %v1032, %v1224
    %v1289 = vadd.f32 %v1033, %v1225
    %v1290 = vadd.f32 %v1034, %v1226
    %v1291 = vadd.f32 %v1035, %v1227
    %v1292 = vadd.f32 %v1036, %v1228
    %v1293 = vadd.f32 %v1037, %v1229
    %v1294 = vadd.f32 %v1038, %v1230
    %v1295 = vadd.f32 %v1039, %v1231
    %v1296 = vadd.f32 %v1040, %v1232
    %v1297 = vadd.f32 %v1041, %v1233
    %v1298 = vadd.f32 %v1042, %v1234
    %v1299 = vadd.f32 %v1043, %v1235
    %v1300 = vadd.f32 %v1044, %v1236
    %v1301 = vadd.f32 %v1045, %v1237
    %v1302 = vadd.f32 %v1046, %v1238
    %v1303 = vadd.f32 %v1047, %v1239
    %v1304 = vadd.f32 %v1048, %v1240
    %v1305 = vadd.f32 %v1049, %v1241
    %v1306 = vadd.f32 %v1050, %v1242
    %v1307 = vadd.f32 %v1051, %v1243
    %v1308 = vadd.f32 %v1052, %v1244
    %v1309 = vadd.f32 %v1053, %v1245
    %v1310 = vadd.f32 %v1054, %v1246
    %v1311 = vadd.f32 %v1055, %v1247
    %v1312 = vadd.f32 %v1056, %v1248
    %v1313 = vadd.f32 %v1057, %v1249
    %v1314 = vadd.f32 %v1058, %v1250
    %v1315 = vadd.f32 %v1059, %v1251
    %v1316 = vadd.f32 %v1060, %v1252
    %v1317 = vadd.f32 %v1061, %v1253
    %v1318 = vadd.f32 %v1062, %v1254
    %v1319 = vadd.f32 %v1063, %v1255
    %v1320 = vadd.f32 %v1064, %v1256
    %v1321 = vadd.f32 %v1065, %v1257
    %v1322 = vadd.f32 %v1066, %v1258
    %v1323 = vadd.f32 %v1067, %v1259
    %v1324 = vadd.f32 %v1068, %v1260
    %v1325 = vadd.f32 %v1069, %v1261
    %v1326 = vadd.f32 %v1070, %v1262
    %v1327 = vadd.f32 %v1071, %v1263
    %v1328 = vadd.f32 %v1072, %v1264
    %v1329 = vadd.f32 %v1073, %v1265
    %v1330 = vadd.f32 %v1074, %v1266
    %v1331 = vadd.f32 %v1075, %v1267
    %v1332 = vadd.f32 %v1076, %v1268
    %v1333 = vadd.f32 %v1077, %v1269
    %v1334 = vadd.f32 %v1078, %v1270
    %v1335 = vadd.f32 %v1079, %v1271
    %v1336 = vadd.f32 %v1080, %v1272
    %v1337 = vadd.f32 %v1081, %v1273
    %v1338 = vadd.f32 %v1082, %v1274
    %v1339 = vadd.f32 %v1083, %v1275
    %v1340 = vadd.f32 %v1084, %v1276
    %v1341 = vadd.f32 %v1085, %v1277
    %v1342 = vadd.f32 %v1086, %v1278
    %v1343 = vadd.f32 %v1087, %v1279
    %1344 = vst [vmem:[#allocation11] sm:$0xff] %v1280
    %1345 = vst [vmem:[#allocation11 + $0x8] sm:$0xff] %v1281
    %1346 = vst [vmem:[#allocation11 + $0x10] sm:$0xff] %v1282
    %1347 = vst [vmem:[#allocation11 + $0x18] sm:$0xff] %v1283
    %1348 = vst [vmem:[#allocation11 + $0x20] sm:$0xff] %v1284
    %1349 = vst [vmem:[#allocation11 + $0x28] sm:$0xff] %v1285
    %1350 = vst [vmem:[#allocation11 + $0x30] sm:$0xff] %v1286
    %1351 = vst [vmem:[#allocation11 + $0x38] sm:$0xff] %v1287
    %1352 = vst [vmem:[#allocation11 + $0x40] sm:$0xff] %v1288
    %1353 = vst [vmem:[#allocation11 + $0x48] sm:$0xff] %v1289
    %1354 = vst [vmem:[#allocation11 + $0x50] sm:$0xff] %v1290
    %1355 = vst [vmem:[#allocation11 + $0x58] sm:$0xff] %v1291
    %1356 = vst [vmem:[#allocation11 + $0x60] sm:$0xff] %v1292
    %1357 = vst [vmem:[#allocation11 + $0x68] sm:$0xff] %v1293
    %1358 = vst [vmem:[#allocation11 + $0x70] sm:$0xff] %v1294
    %1359 = vst [vmem:[#allocation11 + $0x78] sm:$0xff] %v1295
    %1360 = vst [vmem:[#allocation11 + $0x80] sm:$0xff] %v1296
    %1361 = vst [vmem:[#allocation11 + $0x88] sm:$0xff] %v1297
    %1362 = vst [vmem:[#allocation11 + $0x90] sm:$0xff] %v1298
    %1363 = vst [vmem:[#allocation11 + $0x98] sm:$0xff] %v1299
    %1364 = vst [vmem:[#allocation11 + $0xa0] sm:$0xff] %v1300
    %1365 = vst [vmem:[#allocation11 + $0xa8] sm:$0xff] %v1301
    %1366 = vst [vmem:[#allocation11 + $0xb0] sm:$0xff] %v1302
    %1367 = vst [vmem:[#allocation11 + $0xb8] sm:$0xff] %v1303
    %1368 = vst [vmem:[#allocation11 + $0xc0] sm:$0xff] %v1304
    %1369 = vst [vmem:[#allocation11 + $0xc8] sm:$0xff] %v1305
    %1370 = vst [vmem:[#allocation11 + $0xd0] sm:$0xff] %v1306
    %1371 = vst [vmem:[#allocation11 + $0xd8] sm:$0xff] %v1307
    %1372 = vst [vmem:[#allocation11 + $0xe0] sm:$0xff] %v1308
    %1373 = vst [vmem:[#allocation11 + $0xe8] sm:$0xff] %v1309
    %1374 = vst [vmem:[#allocation11 + $0xf0] sm:$0xff] %v1310
    %1375 = vst [vmem:[#allocation11 + $0xf8] sm:$0xff] %v1311
    %1376 = vst [vmem:[#allocation11 + $0x100] sm:$0xff] %v1312
    %1377 = vst [vmem:[#allocation11 + $0x108] sm:$0xff] %v1313
    %1378 = vst [vmem:[#allocation11 + $0x110] sm:$0xff] %v1314
    %1379 = vst [vmem:[#allocation11 + $0x118] sm:$0xff] %v1315
    %1380 = vst [vmem:[#allocation11 + $0x120] sm:$0xff] %v1316
    %1381 = vst [vmem:[#allocation11 + $0x128] sm:$0xff] %v1317
    %1382 = vst [vmem:[#allocation11 + $0x130] sm:$0xff] %v1318
    %1383 = vst [vmem:[#allocation11 + $0x138] sm:$0xff] %v1319
    %1384 = vst [vmem:[#allocation11 + $0x140] sm:$0xff] %v1320
    %1385 = vst [vmem:[#allocation11 + $0x148] sm:$0xff] %v1321
    %1386 = vst [vmem:[#allocation11 + $0x150] sm:$0xff] %v1322
    %1387 = vst [vmem:[#allocation11 + $0x158] sm:$0xff] %v1323
    %1388 = vst [vmem:[#allocation11 + $0x160] sm:$0xff] %v1324
    %1389 = vst [vmem:[#allocation11 + $0x168] sm:$0xff] %v1325
    %1390 = vst [vmem:[#allocation11 + $0x170] sm:$0xff] %v1326
    %1391 = vst [vmem:[#allocation11 + $0x178] sm:$0xff] %v1327
    %1392 = vst [vmem:[#allocation11 + $0x180] sm:$0xff] %v1328
    %1393 = vst [vmem:[#allocation11 + $0x188] sm:$0xff] %v1329
    %1394 = vst [vmem:[#allocation11 + $0x190] sm:$0xff] %v1330
    %1395 = vst [vmem:[#allocation11 + $0x198] sm:$0xff] %v1331
    %1396 = vst [vmem:[#allocation11 + $0x1a0] sm:$0xff] %v1332
    %1397 = vst [vmem:[#allocation11 + $0x1a8] sm:$0xff] %v1333
    %1398 = vst [vmem:[#allocation11 + $0x1b0] sm:$0xff] %v1334
    %1399 = vst [vmem:[#allocation11 + $0x1b8] sm:$0xff] %v1335
    %1400 = vst [vmem:[#allocation11 + $0x1c0] sm:$0xff] %v1336
    %1401 = vst [vmem:[#allocation11 + $0x1c8] sm:$0xff] %v1337
    %1402 = vst [vmem:[#allocation11 + $0x1d0] sm:$0xff] %v1338
    %1403 = vst [vmem:[#allocation11 + $0x1d8] sm:$0xff] %v1339
    %1404 = vst [vmem:[#allocation11 + $0x1e0] sm:$0xff] %v1340
    %1405 = vst [vmem:[#allocation11 + $0x1e8] sm:$0xff] %v1341
    %1406 = vst [vmem:[#allocation11 + $0x1f0] sm:$0xff] %v1342
    %1407 = vst [vmem:[#allocation11 + $0x1f8] sm:$0xff] %v1343
    // Predicated region
    $region30: #{tpu_custom_call.1} parent=1 // pred_check
      _
    $region31: #{tpu_custom_call.1} parent=1 // pred_check_branch
      %1409 = sbr.rel (0) target = $region33
    $region32: #{tpu_custom_call.1} parent=1 // pred_region
      %s1411 = ssub.s32 8192, 8192
      %1412 = vsyncadd [#allocation4], %s1411
      %s1413 = sshll.u32 [#allocation8], 4
      %s1414 = int_to_ptr.vmem [resolvable:$true] %s1413
      %1419 = dma.vmem_to_hbm [thread:$0]  %s1414, 8192, %s3, [#allocation4], 128, 128, 8
    $region33: #{tpu_custom_call.1} parent=1 // pred_fallthru
      _
    // Predicated region
    $region34: #{tpu_custom_call.1} parent=1 // pred_check
      _
    $region35: #{tpu_custom_call.1} parent=1 // pred_check_branch
      %1421 = sbr.rel (0) target = $region37
    $region36: #{tpu_custom_call.1} parent=1 // pred_region
      %s1423 = ssub.s32 8192, 8192
      %1424 = vsyncadd [#allocation10], %s1423
      %s1425 = sshll.u32 [#allocation9], 4
      %s1426 = int_to_ptr.vmem [resolvable:$true] %s1425
      %1431 = dma.vmem_to_hbm [thread:$0]  %s1426, 8192, %s4, [#allocation10], 128, 128, 8
    $region37: #{tpu_custom_call.1} parent=1 // pred_fallthru
      _
    // Predicated region
    $region38: #{tpu_custom_call.1} parent=1 // pred_check
      _
    $region39: #{tpu_custom_call.1} parent=1 // pred_check_branch
      %1433 = sbr.rel (0) target = $region41
    $region40: #{tpu_custom_call.1} parent=1 // pred_region
      %s1435 = ssub.s32 8192, 8192
      %1436 = vsyncadd [#allocation10], %s1435
      %s1437 = sshll.u32 [#allocation11], 4
      %s1438 = int_to_ptr.vmem [resolvable:$true] %s1437
      %1443 = dma.vmem_to_hbm [thread:$0]  %s1438, 8192, %s5, [#allocation10], 128, 128, 8
    $region41: #{tpu_custom_call.1} parent=1 // pred_fallthru
      _
    // Predicated region
    $region42: #{tpu_custom_call.1} parent=1 // pred_check
      _
    $region43: #{tpu_custom_call.1} parent=1 // pred_check_branch
      %1445 = sbr.rel (0) target = $region45
    $region44: #{tpu_custom_call.1} parent=1 // pred_region
      %1446 = dma.done [#allocation4], 8192
    $region45: #{tpu_custom_call.1} parent=1 // pred_fallthru
      _
    // Predicated region
    $region46: #{tpu_custom_call.1} parent=1 // pred_check
      _
    $region47: #{tpu_custom_call.1} parent=1 // pred_check_branch
      %1448 = sbr.rel (0) target = $region49
    $region48: #{tpu_custom_call.1} parent=1 // pred_region
      %1449 = dma.done [#allocation10], 8192
    $region49: #{tpu_custom_call.1} parent=1 // pred_fallthru
      _
    // Predicated region
    $region50: #{tpu_custom_call.1} parent=1 // pred_check
      _
    $region51: #{tpu_custom_call.1} parent=1 // pred_check_branch
      %1451 = sbr.rel (0) target = $region53
    $region52: #{tpu_custom_call.1} parent=1 // pred_region
      %1452 = dma.done [#allocation10], 8192
    $region53: #{tpu_custom_call.1} parent=1 // pred_fallthru
      _
    %1453 = vsyncpa [#allocation3], 1
    %1454 = vsyncpa [#allocation6], 1
    %1455 = vsyncpa [#allocation4], 1
    %1456 = vsyncpa [#allocation10], 1

</llo_original>
